<compile_context>
chip_gen: v6e
topology: v6e:2x2x1
jax: 0.10.0
libtpu: 0.0.40
codegen_flags: <defaults>
</compile_context>

<pallas_src>
import functools

import jax
import jax.numpy as jnp
from jax import lax
from jax.experimental import pallas as pl
from jax.experimental.pallas import tpu as pltpu


def _round_up(x, m):
    return (x + m - 1) // m * m


def _ln_rows(x, gamma, beta, eps):
    """Single-pass LayerNorm over the last axis, f32 math."""
    mean = jnp.mean(x, axis=-1, keepdims=True)
    var = jnp.mean(x * x, axis=-1, keepdims=True) - mean * mean
    inv = lax.rsqrt(jnp.maximum(var, 0.0) + eps)
    return (x - mean) * inv * gamma + beta


# ---------------------------------------------------------------------------
# Path A: HBM-resident word table, per-row DMA gather (large vocab).
# ---------------------------------------------------------------------------
def _emb_ln_gather_kernel(ids_smem, word_hbm, gid_ref, gene_ref, gamma_ref,
                          beta_ref, o_ref, wbuf, sem, *, eps, chunk, nchunks):
    """One grid step = one tile of T = chunk*nchunks tokens.

    ids_smem : (N_pad,)   int32  SMEM (scalar-prefetched flat word ids)
    word_hbm : (V, H)            HBM  (raw ref, gathered row-by-row via DMA)
    gid_ref  : (T, 1)     int32  VMEM (gene ids of this tile)
    gene_ref : (G, H)            VMEM (small gene table, resident)
    gamma/beta : (1, H)   f32
    o_ref    : (T, H)
    wbuf     : (2, C, H)  scratch (rotating buffer for gathered word rows)
    sem      : (2,)       DMA semaphores (one per buffer slot)
    """
    t = pl.program_id(0)
    T, H = o_ref.shape
    G = gene_ref.shape[0]
    C = chunk
    base = t * T

    # Hoisted once per tile (JAX does not CSE broadcast_in_dim).
    iota_g = lax.broadcasted_iota(jnp.int32, (C, G), 1)
    gamma = gamma_ref[...]
    beta = beta_ref[...]
    gene_tab = gene_ref[...]

    def start_chunk(c, slot):
        off = base + c * C

        def body(i, carry):
            row = ids_smem[off + i]
            pltpu.make_async_copy(
                word_hbm.at[pl.ds(row, 1)],        # (1, H) row in HBM
                wbuf.at[slot, pl.ds(i, 1)],        # (1, H) row in VMEM
                sem.at[slot],
            ).start()
            return carry

        # Partial unroll: lets scalar address math co-issue with the
        # misc-slot descriptor pushes (C is always a multiple of 8).
        lax.fori_loop(0, C, body, 0, unroll=8)

    def wait_chunk(slot):
        # All C row DMAs signalled sem[slot]; one aggregated (C, H)-sized wait
        # (same total bytes) is equivalent and avoids C descriptor builds.
        pltpu.make_async_copy(
            word_hbm.at[pl.ds(0, C)],
            wbuf.at[slot],
            sem.at[slot],
        ).wait()

    def compute_chunk(c, slot):
        w = wbuf[slot].astype(jnp.float32)                    # (C, H)
        gid = gid_ref[pl.ds(c * C, C), :]                     # (C, 1)
        oh = (gid == iota_g).astype(gene_tab.dtype)
        gene = jnp.dot(oh, gene_tab, preferred_element_type=jnp.float32)
        y = _ln_rows(w + gene, gamma, beta, eps)
        o_ref[pl.ds(c * C, C), :] = y.astype(o_ref.dtype)

    # Intra-tile pipeline: chunk c+1's row DMAs are issued before waiting on
    # chunk c, so only the first chunk's latency is exposed.  Tiles are
    # independent -> the grid axis stays "parallel" (megacore-safe) and every
    # started DMA is waited on inside its own tile.
    start_chunk(0, 0)
    for c in range(nchunks):
        slot = c & 1
        if c + 1 < nchunks:
            start_chunk(c + 1, (c + 1) & 1)
        wait_chunk(slot)
        compute_chunk(c, slot)


# ---------------------------------------------------------------------------
# Path B: VMEM-resident word table, one-hot MXU gather (small vocab).
# ---------------------------------------------------------------------------
def _emb_ln_resident_kernel(ids_ref, gid_ref, word_ref, gene_ref, gamma_ref,
                            beta_ref, o_ref, *, eps, chunk, nchunks):
    C = chunk
    V = word_ref.shape[0]
    G = gene_ref.shape[0]

    iota_v = lax.broadcasted_iota(jnp.int32, (C, V), 1)
    iota_g = lax.broadcasted_iota(jnp.int32, (C, G), 1)
    gamma = gamma_ref[...]
    beta = beta_ref[...]
    word_tab = word_ref[...]
    gene_tab = gene_ref[...]

    for c in range(nchunks):
        rows = pl.ds(c * C, C)
        wid = ids_ref[rows, :]                                # (C, 1)
        gid = gid_ref[rows, :]
        w = jnp.dot((wid == iota_v).astype(word_tab.dtype), word_tab,
                    preferred_element_type=jnp.float32)
        g = jnp.dot((gid == iota_g).astype(gene_tab.dtype), gene_tab,
                    preferred_element_type=jnp.float32)
        y = _ln_rows(w + g, gamma, beta, eps)
        o_ref[rows, :] = y.astype(o_ref.dtype)


# ---------------------------------------------------------------------------
# Wrapper
# ---------------------------------------------------------------------------
def roberta_hier_embeddings(input_ids, gene_ids, word_table, gene_table,
                            ln_gamma, ln_beta, *, eps=1e-12,
                            tokens_per_tile=512, rows_per_chunk=64,
                            out_dtype=jnp.float32,
                            vmem_resident_word_bytes=8 * 1024 * 1024,
                            force_hbm_gather=False):
    """Forward pass of RobertaHierarchicalEmbeddingsV1 (eval mode)."""
    B, S = input_ids.shape
    V, H = word_table.shape
    G, _ = gene_table.shape
    N = B * S

    # Chunk / tile sizing: C multiple of 8, T a multiple of C.
    C = _round_up(min(rows_per_chunk, N), 8)
    T = min(_round_up(tokens_per_tile, C), _round_up(N, C))
    N_pad = _round_up(N, T)
    num_tiles = N_pad // T
    nchunks = T // C

    tab_bytes = V * H * jnp.dtype(word_table.dtype).itemsize
    use_resident = (not force_hbm_gather and tab_bytes <= vmem_resident_word_bytes) or (V < C)

    # Clamp ids so a bad id can never become an OOB DMA / silent garbage row.
    ids = jnp.clip(input_ids.reshape(-1).astype(jnp.int32), 0, V - 1)
    gids = jnp.clip(gene_ids.reshape(-1).astype(jnp.int32), 0, G - 1)
    pad = N_pad - N
    if pad:
        ids = jnp.concatenate([ids, jnp.zeros((pad,), jnp.int32)])
        gids = jnp.concatenate([gids, jnp.zeros((pad,), jnp.int32)])
    gids2d = gids.reshape(N_pad, 1)

    # VMEM budget derived from actual footprint (keeps headroom on v7x 64 MiB).
    out_isz = jnp.dtype(out_dtype).itemsize
    tab_isz = jnp.dtype(word_table.dtype).itemsize
    est = (2 * T * H * out_isz                      # output double buffer
           + 2 * G * H * jnp.dtype(gene_table.dtype).itemsize
           + 4 * H * 4 + 4 * T * 4)                 # gamma/beta + id blocks
    est += 2 * V * H * tab_isz if use_resident else 2 * C * H * tab_isz
    vmem_limit = int(min(max(2 * est, 16 * 1024 * 1024), 100 * 1024 * 1024))

    if use_resident:
        kernel = functools.partial(_emb_ln_resident_kernel, eps=eps,
                                   chunk=C, nchunks=nchunks)
        out = pl.pallas_call(
            kernel,
            out_shape=jax.ShapeDtypeStruct((N_pad, H), out_dtype),
            grid_spec=pltpu.PrefetchScalarGridSpec(
                num_scalar_prefetch=0,
                grid=(num_tiles,),
                in_specs=[
                    pl.BlockSpec((T, 1), lambda t: (t, 0)),     # word ids
                    pl.BlockSpec((T, 1), lambda t: (t, 0)),     # gene ids
                    pl.BlockSpec((V, H), lambda t: (0, 0)),     # word table (VMEM)
                    pl.BlockSpec((G, H), lambda t: (0, 0)),     # gene table (VMEM)
                    pl.BlockSpec((1, H), lambda t: (0, 0)),     # LN gamma
                    pl.BlockSpec((1, H), lambda t: (0, 0)),     # LN beta
                ],
                out_specs=pl.BlockSpec((T, H), lambda t: (t, 0)),
            ),
            compiler_params=pltpu.CompilerParams(
                dimension_semantics=("parallel",),
                vmem_limit_bytes=vmem_limit,
            ),
        )(ids.reshape(N_pad, 1), gids2d, word_table, gene_table,
          ln_gamma, ln_beta)
    else:
        # TODO(synk): for very long contexts (N in the 100K+ range) the flat
        # scalar-prefetch id array can overflow SMEM; switch to DMA-ing the
        # per-tile id slice into SMEM scratch inside the kernel at that scale.
        kernel = functools.partial(_emb_ln_gather_kernel, eps=eps,
                                   chunk=C, nchunks=nchunks)
        out = pl.pallas_call(
            kernel,
            out_shape=jax.ShapeDtypeStruct((N_pad, H), out_dtype),
            grid_spec=pltpu.PrefetchScalarGridSpec(
                num_scalar_prefetch=1,                 # flat word ids -> SMEM
                grid=(num_tiles,),
                in_specs=[
                    pl.BlockSpec(memory_space=pl.ANY),              # word table in HBM
                    pl.BlockSpec((T, 1), lambda t, ids: (t, 0)),    # gene ids (tile)
                    pl.BlockSpec((G, H), lambda t, ids: (0, 0)),    # gene table (VMEM)
                    pl.BlockSpec((1, H), lambda t, ids: (0, 0)),    # LN gamma
                    pl.BlockSpec((1, H), lambda t, ids: (0, 0)),    # LN beta
                ],
                out_specs=pl.BlockSpec((T, H), lambda t, ids: (t, 0)),
                scratch_shapes=[
                    pltpu.VMEM((2, C, H), word_table.dtype),        # word-row buffer
                    pltpu.SemaphoreType.DMA((2,)),                  # one sem per slot
                ],
            ),
            compiler_params=pltpu.CompilerParams(
                dimension_semantics=("parallel",),
                vmem_limit_bytes=vmem_limit,
            ),
        )(ids, word_table, gids2d, gene_table, ln_gamma, ln_beta)

    return out[:N].reshape(B, S, H)


if __name__ == "__main__":
    # Small config consistent with the module; H lane-dense (multiple of 128).
    B, S, H = 2, 128, 128
    VOCAB, MAX_GENES = 512, 32
    PAD_TOKEN_ID = 1
    EPS = 1e-12

    key = jax.random.PRNGKey(0)
    k_w, k_g, k_ids, k_gids = jax.random.split(key, 4)

    word_table = 0.02 * jax.random.normal(k_w, (VOCAB, H), dtype=jnp.float32)
    word_table = word_table.at[PAD_TOKEN_ID].set(0.0)   # nn.Embedding padding_idx row
    gene_table = 0.02 * jax.random.normal(k_g, (MAX_GENES, H), dtype=jnp.float32)
    ln_gamma = jnp.ones((1, H), dtype=jnp.float32)       # nn.LayerNorm default init
    ln_beta = jnp.zeros((1, H), dtype=jnp.float32)

    input_ids = jax.random.randint(k_ids, (B, S), 0, VOCAB, dtype=jnp.int32)
    gene_ids = jax.random.randint(k_gids, (B, S), 0, MAX_GENES, dtype=jnp.int32)

    # Pure-JAX reference.
    ref = word_table[input_ids] + gene_table[gene_ids]
    mean = ref.mean(-1, keepdims=True)
    var = ((ref - mean) ** 2).mean(-1, keepdims=True)
    ref = (ref - mean) / jnp.sqrt(var + EPS) * ln_gamma.reshape(-1) + ln_beta.reshape(-1)

    # Path B: small vocab -> VMEM-resident one-hot MXU gather (default here).
    out_fast = roberta_hier_embeddings(input_ids, gene_ids, word_table,
                                       gene_table, ln_gamma, ln_beta, eps=EPS)
    out_fast = jax.block_until_ready(out_fast)
    assert out_fast.shape == (B, S, H)
    assert jnp.allclose(out_fast, ref, atol=1e-5, rtol=1e-5), \
        "resident-path mismatch vs JAX reference"

    # Path A: force the HBM per-row DMA gather (large-vocab path), multi-tile,
    # multi-chunk so the intra-tile pipeline + aggregated wait get exercised.
    out_dma = roberta_hier_embeddings(input_ids, gene_ids, word_table,
                                      gene_table, ln_gamma, ln_beta, eps=EPS,
                                      tokens_per_tile=128, rows_per_chunk=64,
                                      force_hbm_gather=True)
    out_dma = jax.block_until_ready(out_dma)
    assert jnp.allclose(out_dma, ref, atol=1e-5, rtol=1e-5), \
        "gather-path mismatch vs JAX reference"

    # TODO(synk): dropout (hidden_dropout_prob) is identity in eval mode and is not implemented.
    print("KERNEL_OK")
</pallas_src>

<mosaic_0001>
module attributes {stable_mosaic.version = 11 : i64} {
  func.func @_emb_ln_resident_kernel(%arg0: i32, %arg1: memref<256x1xi32, #tpu.memory_space<vmem>>, %arg2: memref<256x1xi32, #tpu.memory_space<vmem>>, %arg3: memref<512x128xf32, #tpu.memory_space<vmem>>, %arg4: memref<32x128xf32, #tpu.memory_space<vmem>>, %arg5: memref<1x128xf32, #tpu.memory_space<vmem>>, %arg6: memref<1x128xf32, #tpu.memory_space<vmem>>, %arg7: memref<256x128xf32, #tpu.memory_space<vmem>>) attributes {dimension_semantics = [#tpu.dimension_semantics<parallel>], iteration_bounds = array<i64: 1>, scalar_prefetch = 0 : i64, scratch_operands = 0 : i64, tpu.core_type = #tpu.core_type<tc>, window_params = [{transform_indices = @transform_0, window_bounds = array<i64: 256, 1>}, {transform_indices = @transform_1, window_bounds = array<i64: 256, 1>}, {pipeline_mode = #tpu.pipeline_mode<synchronous>, transform_indices = @transform_2, window_bounds = array<i64: 512, 128>}, {pipeline_mode = #tpu.pipeline_mode<synchronous>, transform_indices = @transform_3, window_bounds = array<i64: 32, 128>}, {pipeline_mode = #tpu.pipeline_mode<synchronous>, transform_indices = @transform_4, window_bounds = array<i64: 1, 128>}, {pipeline_mode = #tpu.pipeline_mode<synchronous>, transform_indices = @transform_5, window_bounds = array<i64: 1, 128>}, {transform_indices = @transform_6, window_bounds = array<i64: 256, 128>}]} {
    %0 = tpu.iota {dimensions = array<i32: 1>} : vector<64x512xi32>
    %1 = tpu.iota {dimensions = array<i32: 1>} : vector<64x32xi32>
    %c0 = arith.constant 0 : index
    %c0_0 = arith.constant 0 : index
    %2 = vector.load %arg5[%c0, %c0_0] : memref<1x128xf32, #tpu.memory_space<vmem>>, vector<1x128xf32>
    %c0_1 = arith.constant 0 : index
    %c0_2 = arith.constant 0 : index
    %3 = vector.load %arg6[%c0_1, %c0_2] : memref<1x128xf32, #tpu.memory_space<vmem>>, vector<1x128xf32>
    %c0_3 = arith.constant 0 : index
    %c0_4 = arith.constant 0 : index
    %4 = vector.load %arg3[%c0_3, %c0_4] : memref<512x128xf32, #tpu.memory_space<vmem>>, vector<512x128xf32>
    %c0_5 = arith.constant 0 : index
    %c0_6 = arith.constant 0 : index
    %5 = vector.load %arg4[%c0_5, %c0_6] : memref<32x128xf32, #tpu.memory_space<vmem>>, vector<32x128xf32>
    %c0_7 = arith.constant 0 : index
    %c0_8 = arith.constant 0 : index
    %6 = vector.load %arg1[%c0_7, %c0_8] : memref<256x1xi32, #tpu.memory_space<vmem>>, vector<64x1xi32>
    %c0_9 = arith.constant 0 : index
    %c0_10 = arith.constant 0 : index
    %7 = vector.load %arg2[%c0_9, %c0_10] : memref<256x1xi32, #tpu.memory_space<vmem>>, vector<64x1xi32>
    %8 = vector.broadcast %6 : vector<64x1xi32> to vector<64x512xi32>
    %9 = arith.cmpi eq, %8, %0 : vector<64x512xi32>
    %10 = arith.extui %9 : vector<64x512xi1> to vector<64x512xi32>
    %11 = arith.sitofp %10 : vector<64x512xi32> to vector<64x512xf32>
    %cst = arith.constant dense<0.000000e+00> : vector<64x128xf32>
    %12 = tpu.matmul %11, %4, %cst {dimension_numbers = #tpu.dot_dimension_numbers<[1], [0], [0], [1], [0, 0, 1, 1], [], []>} : vector<64x512xf32>, vector<512x128xf32>, vector<64x128xf32> -> vector<64x128xf32>
    %13 = vector.broadcast %7 : vector<64x1xi32> to vector<64x32xi32>
    %14 = arith.cmpi eq, %13, %1 : vector<64x32xi32>
    %15 = arith.extui %14 : vector<64x32xi1> to vector<64x32xi32>
    %16 = arith.sitofp %15 : vector<64x32xi32> to vector<64x32xf32>
    %cst_11 = arith.constant dense<0.000000e+00> : vector<64x128xf32>
    %17 = tpu.matmul %16, %5, %cst_11 {dimension_numbers = #tpu.dot_dimension_numbers<[1], [0], [0], [1], [0, 0, 1, 1], [], []>} : vector<64x32xf32>, vector<32x128xf32>, vector<64x128xf32> -> vector<64x128xf32>
    %18 = arith.addf %12, %17 : vector<64x128xf32>
    %cst_12 = arith.constant dense<0.000000e+00> : vector<64xf32>
    %19 = vector.multi_reduction <add>, %18, %cst_12 [1] : vector<64x128xf32> to vector<64xf32>
    %20 = vector.shape_cast %19 : vector<64xf32> to vector<64x1xf32>
    %cst_13 = arith.constant 1.280000e+02 : f32
    %21 = vector.broadcast %cst_13 : f32 to vector<64x1xf32>
    %22 = arith.divf %20, %21 : vector<64x1xf32>
    %23 = arith.mulf %18, %18 : vector<64x128xf32>
    %cst_14 = arith.constant dense<0.000000e+00> : vector<64xf32>
    %24 = vector.multi_reduction <add>, %23, %cst_14 [1] : vector<64x128xf32> to vector<64xf32>
    %25 = vector.shape_cast %24 : vector<64xf32> to vector<64x1xf32>
    %cst_15 = arith.constant 1.280000e+02 : f32
    %26 = vector.broadcast %cst_15 : f32 to vector<64x1xf32>
    %27 = arith.divf %25, %26 : vector<64x1xf32>
    %28 = arith.mulf %22, %22 : vector<64x1xf32>
    %29 = arith.subf %27, %28 : vector<64x1xf32>
    %cst_16 = arith.constant 0.000000e+00 : f32
    %30 = vector.broadcast %cst_16 : f32 to vector<64x1xf32>
    %31 = arith.maximumf %29, %30 : vector<64x1xf32>
    %cst_17 = arith.constant 9.99999996E-13 : f32
    %32 = vector.broadcast %cst_17 : f32 to vector<64x1xf32>
    %33 = arith.addf %31, %32 : vector<64x1xf32>
    %34 = math.rsqrt %33 : vector<64x1xf32>
    %35 = vector.broadcast %22 : vector<64x1xf32> to vector<64x128xf32>
    %36 = arith.subf %18, %35 : vector<64x128xf32>
    %37 = vector.broadcast %34 : vector<64x1xf32> to vector<64x128xf32>
    %38 = arith.mulf %36, %37 : vector<64x128xf32>
    %39 = vector.broadcast %2 : vector<1x128xf32> to vector<64x128xf32>
    %40 = arith.mulf %38, %39 : vector<64x128xf32>
    %41 = vector.broadcast %3 : vector<1x128xf32> to vector<64x128xf32>
    %42 = arith.addf %40, %41 : vector<64x128xf32>
    %c0_18 = arith.constant 0 : index
    %c0_19 = arith.constant 0 : index
    %43 = vector.load %arg7[%c0_18, %c0_19] : memref<256x128xf32, #tpu.memory_space<vmem>>, vector<64x128xf32>
    tpu.vector_store %arg7[%c0_18, %c0_19], %42 {strides = array<i32>} : memref<256x128xf32, #tpu.memory_space<vmem>>, vector<64x128xf32>,
    %c64 = arith.constant 64 : index
    %c0_20 = arith.constant 0 : index
    %44 = vector.load %arg1[%c64, %c0_20] : memref<256x1xi32, #tpu.memory_space<vmem>>, vector<64x1xi32>
    %c64_21 = arith.constant 64 : index
    %c0_22 = arith.constant 0 : index
    %45 = vector.load %arg2[%c64_21, %c0_22] : memref<256x1xi32, #tpu.memory_space<vmem>>, vector<64x1xi32>
    %46 = vector.broadcast %44 : vector<64x1xi32> to vector<64x512xi32>
    %47 = arith.cmpi eq, %46, %0 : vector<64x512xi32>
    %48 = arith.extui %47 : vector<64x512xi1> to vector<64x512xi32>
    %49 = arith.sitofp %48 : vector<64x512xi32> to vector<64x512xf32>
    %cst_23 = arith.constant dense<0.000000e+00> : vector<64x128xf32>
    %50 = tpu.matmul %49, %4, %cst_23 {dimension_numbers = #tpu.dot_dimension_numbers<[1], [0], [0], [1], [0, 0, 1, 1], [], []>} : vector<64x512xf32>, vector<512x128xf32>, vector<64x128xf32> -> vector<64x128xf32>
    %51 = vector.broadcast %45 : vector<64x1xi32> to vector<64x32xi32>
    %52 = arith.cmpi eq, %51, %1 : vector<64x32xi32>
    %53 = arith.extui %52 : vector<64x32xi1> to vector<64x32xi32>
    %54 = arith.sitofp %53 : vector<64x32xi32> to vector<64x32xf32>
    %cst_24 = arith.constant dense<0.000000e+00> : vector<64x128xf32>
    %55 = tpu.matmul %54, %5, %cst_24 {dimension_numbers = #tpu.dot_dimension_numbers<[1], [0], [0], [1], [0, 0, 1, 1], [], []>} : vector<64x32xf32>, vector<32x128xf32>, vector<64x128xf32> -> vector<64x128xf32>
    %56 = arith.addf %50, %55 : vector<64x128xf32>
    %cst_25 = arith.constant dense<0.000000e+00> : vector<64xf32>
    %57 = vector.multi_reduction <add>, %56, %cst_25 [1] : vector<64x128xf32> to vector<64xf32>
    %58 = vector.shape_cast %57 : vector<64xf32> to vector<64x1xf32>
    %cst_26 = arith.constant 1.280000e+02 : f32
    %59 = vector.broadcast %cst_26 : f32 to vector<64x1xf32>
    %60 = arith.divf %58, %59 : vector<64x1xf32>
    %61 = arith.mulf %56, %56 : vector<64x128xf32>
    %cst_27 = arith.constant dense<0.000000e+00> : vector<64xf32>
    %62 = vector.multi_reduction <add>, %61, %cst_27 [1] : vector<64x128xf32> to vector<64xf32>
    %63 = vector.shape_cast %62 : vector<64xf32> to vector<64x1xf32>
    %cst_28 = arith.constant 1.280000e+02 : f32
    %64 = vector.broadcast %cst_28 : f32 to vector<64x1xf32>
    %65 = arith.divf %63, %64 : vector<64x1xf32>
    %66 = arith.mulf %60, %60 : vector<64x1xf32>
    %67 = arith.subf %65, %66 : vector<64x1xf32>
    %cst_29 = arith.constant 0.000000e+00 : f32
    %68 = vector.broadcast %cst_29 : f32 to vector<64x1xf32>
    %69 = arith.maximumf %67, %68 : vector<64x1xf32>
    %cst_30 = arith.constant 9.99999996E-13 : f32
    %70 = vector.broadcast %cst_30 : f32 to vector<64x1xf32>
    %71 = arith.addf %69, %70 : vector<64x1xf32>
    %72 = math.rsqrt %71 : vector<64x1xf32>
    %73 = vector.broadcast %60 : vector<64x1xf32> to vector<64x128xf32>
    %74 = arith.subf %56, %73 : vector<64x128xf32>
    %75 = vector.broadcast %72 : vector<64x1xf32> to vector<64x128xf32>
    %76 = arith.mulf %74, %75 : vector<64x128xf32>
    %77 = vector.broadcast %2 : vector<1x128xf32> to vector<64x128xf32>
    %78 = arith.mulf %76, %77 : vector<64x128xf32>
    %79 = vector.broadcast %3 : vector<1x128xf32> to vector<64x128xf32>
    %80 = arith.addf %78, %79 : vector<64x128xf32>
    %c64_31 = arith.constant 64 : index
    %c0_32 = arith.constant 0 : index
    %81 = vector.load %arg7[%c64_31, %c0_32] : memref<256x128xf32, #tpu.memory_space<vmem>>, vector<64x128xf32>
    tpu.vector_store %arg7[%c64_31, %c0_32], %80 {strides = array<i32>} : memref<256x128xf32, #tpu.memory_space<vmem>>, vector<64x128xf32>,
    %c128 = arith.constant 128 : index
    %c0_33 = arith.constant 0 : index
    %82 = vector.load %arg1[%c128, %c0_33] : memref<256x1xi32, #tpu.memory_space<vmem>>, vector<64x1xi32>
    %c128_34 = arith.constant 128 : index
    %c0_35 = arith.constant 0 : index
    %83 = vector.load %arg2[%c128_34, %c0_35] : memref<256x1xi32, #tpu.memory_space<vmem>>, vector<64x1xi32>
    %84 = vector.broadcast %82 : vector<64x1xi32> to vector<64x512xi32>
    %85 = arith.cmpi eq, %84, %0 : vector<64x512xi32>
    %86 = arith.extui %85 : vector<64x512xi1> to vector<64x512xi32>
    %87 = arith.sitofp %86 : vector<64x512xi32> to vector<64x512xf32>
    %cst_36 = arith.constant dense<0.000000e+00> : vector<64x128xf32>
    %88 = tpu.matmul %87, %4, %cst_36 {dimension_numbers = #tpu.dot_dimension_numbers<[1], [0], [0], [1], [0, 0, 1, 1], [], []>} : vector<64x512xf32>, vector<512x128xf32>, vector<64x128xf32> -> vector<64x128xf32>
    %89 = vector.broadcast %83 : vector<64x1xi32> to vector<64x32xi32>
    %90 = arith.cmpi eq, %89, %1 : vector<64x32xi32>
    %91 = arith.extui %90 : vector<64x32xi1> to vector<64x32xi32>
    %92 = arith.sitofp %91 : vector<64x32xi32> to vector<64x32xf32>
    %cst_37 = arith.constant dense<0.000000e+00> : vector<64x128xf32>
    %93 = tpu.matmul %92, %5, %cst_37 {dimension_numbers = #tpu.dot_dimension_numbers<[1], [0], [0], [1], [0, 0, 1, 1], [], []>} : vector<64x32xf32>, vector<32x128xf32>, vector<64x128xf32> -> vector<64x128xf32>
    %94 = arith.addf %88, %93 : vector<64x128xf32>
    %cst_38 = arith.constant dense<0.000000e+00> : vector<64xf32>
    %95 = vector.multi_reduction <add>, %94, %cst_38 [1] : vector<64x128xf32> to vector<64xf32>
    %96 = vector.shape_cast %95 : vector<64xf32> to vector<64x1xf32>
    %cst_39 = arith.constant 1.280000e+02 : f32
    %97 = vector.broadcast %cst_39 : f32 to vector<64x1xf32>
    %98 = arith.divf %96, %97 : vector<64x1xf32>
    %99 = arith.mulf %94, %94 : vector<64x128xf32>
    %cst_40 = arith.constant dense<0.000000e+00> : vector<64xf32>
    %100 = vector.multi_reduction <add>, %99, %cst_40 [1] : vector<64x128xf32> to vector<64xf32>
    %101 = vector.shape_cast %100 : vector<64xf32> to vector<64x1xf32>
    %cst_41 = arith.constant 1.280000e+02 : f32
    %102 = vector.broadcast %cst_41 : f32 to vector<64x1xf32>
    %103 = arith.divf %101, %102 : vector<64x1xf32>
    %104 = arith.mulf %98, %98 : vector<64x1xf32>
    %105 = arith.subf %103, %104 : vector<64x1xf32>
    %cst_42 = arith.constant 0.000000e+00 : f32
    %106 = vector.broadcast %cst_42 : f32 to vector<64x1xf32>
    %107 = arith.maximumf %105, %106 : vector<64x1xf32>
    %cst_43 = arith.constant 9.99999996E-13 : f32
    %108 = vector.broadcast %cst_43 : f32 to vector<64x1xf32>
    %109 = arith.addf %107, %108 : vector<64x1xf32>
    %110 = math.rsqrt %109 : vector<64x1xf32>
    %111 = vector.broadcast %98 : vector<64x1xf32> to vector<64x128xf32>
    %112 = arith.subf %94, %111 : vector<64x128xf32>
    %113 = vector.broadcast %110 : vector<64x1xf32> to vector<64x128xf32>
    %114 = arith.mulf %112, %113 : vector<64x128xf32>
    %115 = vector.broadcast %2 : vector<1x128xf32> to vector<64x128xf32>
    %116 = arith.mulf %114, %115 : vector<64x128xf32>
    %117 = vector.broadcast %3 : vector<1x128xf32> to vector<64x128xf32>
    %118 = arith.addf %116, %117 : vector<64x128xf32>
    %c128_44 = arith.constant 128 : index
    %c0_45 = arith.constant 0 : index
    %119 = vector.load %arg7[%c128_44, %c0_45] : memref<256x128xf32, #tpu.memory_space<vmem>>, vector<64x128xf32>
    tpu.vector_store %arg7[%c128_44, %c0_45], %118 {strides = array<i32>} : memref<256x128xf32, #tpu.memory_space<vmem>>, vector<64x128xf32>,
    %c192 = arith.constant 192 : index
    %c0_46 = arith.constant 0 : index
    %120 = vector.load %arg1[%c192, %c0_46] : memref<256x1xi32, #tpu.memory_space<vmem>>, vector<64x1xi32>
    %c192_47 = arith.constant 192 : index
    %c0_48 = arith.constant 0 : index
    %121 = vector.load %arg2[%c192_47, %c0_48] : memref<256x1xi32, #tpu.memory_space<vmem>>, vector<64x1xi32>
    %122 = vector.broadcast %120 : vector<64x1xi32> to vector<64x512xi32>
    %123 = arith.cmpi eq, %122, %0 : vector<64x512xi32>
    %124 = arith.extui %123 : vector<64x512xi1> to vector<64x512xi32>
    %125 = arith.sitofp %124 : vector<64x512xi32> to vector<64x512xf32>
    %cst_49 = arith.constant dense<0.000000e+00> : vector<64x128xf32>
    %126 = tpu.matmul %125, %4, %cst_49 {dimension_numbers = #tpu.dot_dimension_numbers<[1], [0], [0], [1], [0, 0, 1, 1], [], []>} : vector<64x512xf32>, vector<512x128xf32>, vector<64x128xf32> -> vector<64x128xf32>
    %127 = vector.broadcast %121 : vector<64x1xi32> to vector<64x32xi32>
    %128 = arith.cmpi eq, %127, %1 : vector<64x32xi32>
    %129 = arith.extui %128 : vector<64x32xi1> to vector<64x32xi32>
    %130 = arith.sitofp %129 : vector<64x32xi32> to vector<64x32xf32>
    %cst_50 = arith.constant dense<0.000000e+00> : vector<64x128xf32>
    %131 = tpu.matmul %130, %5, %cst_50 {dimension_numbers = #tpu.dot_dimension_numbers<[1], [0], [0], [1], [0, 0, 1, 1], [], []>} : vector<64x32xf32>, vector<32x128xf32>, vector<64x128xf32> -> vector<64x128xf32>
    %132 = arith.addf %126, %131 : vector<64x128xf32>
    %cst_51 = arith.constant dense<0.000000e+00> : vector<64xf32>
    %133 = vector.multi_reduction <add>, %132, %cst_51 [1] : vector<64x128xf32> to vector<64xf32>
    %134 = vector.shape_cast %133 : vector<64xf32> to vector<64x1xf32>
    %cst_52 = arith.constant 1.280000e+02 : f32
    %135 = vector.broadcast %cst_52 : f32 to vector<64x1xf32>
    %136 = arith.divf %134, %135 : vector<64x1xf32>
    %137 = arith.mulf %132, %132 : vector<64x128xf32>
    %cst_53 = arith.constant dense<0.000000e+00> : vector<64xf32>
    %138 = vector.multi_reduction <add>, %137, %cst_53 [1] : vector<64x128xf32> to vector<64xf32>
    %139 = vector.shape_cast %138 : vector<64xf32> to vector<64x1xf32>
    %cst_54 = arith.constant 1.280000e+02 : f32
    %140 = vector.broadcast %cst_54 : f32 to vector<64x1xf32>
    %141 = arith.divf %139, %140 : vector<64x1xf32>
    %142 = arith.mulf %136, %136 : vector<64x1xf32>
    %143 = arith.subf %141, %142 : vector<64x1xf32>
    %cst_55 = arith.constant 0.000000e+00 : f32
    %144 = vector.broadcast %cst_55 : f32 to vector<64x1xf32>
    %145 = arith.maximumf %143, %144 : vector<64x1xf32>
    %cst_56 = arith.constant 9.99999996E-13 : f32
    %146 = vector.broadcast %cst_56 : f32 to vector<64x1xf32>
    %147 = arith.addf %145, %146 : vector<64x1xf32>
    %148 = math.rsqrt %147 : vector<64x1xf32>
    %149 = vector.broadcast %136 : vector<64x1xf32> to vector<64x128xf32>
    %150 = arith.subf %132, %149 : vector<64x128xf32>
    %151 = vector.broadcast %148 : vector<64x1xf32> to vector<64x128xf32>
    %152 = arith.mulf %150, %151 : vector<64x128xf32>
    %153 = vector.broadcast %2 : vector<1x128xf32> to vector<64x128xf32>
    %154 = arith.mulf %152, %153 : vector<64x128xf32>
    %155 = vector.broadcast %3 : vector<1x128xf32> to vector<64x128xf32>
    %156 = arith.addf %154, %155 : vector<64x128xf32>
    %c192_57 = arith.constant 192 : index
    %c0_58 = arith.constant 0 : index
    %157 = vector.load %arg7[%c192_57, %c0_58] : memref<256x128xf32, #tpu.memory_space<vmem>>, vector<64x128xf32>
    tpu.vector_store %arg7[%c192_57, %c0_58], %156 {strides = array<i32>} : memref<256x128xf32, #tpu.memory_space<vmem>>, vector<64x128xf32>,
    return
  }
  func.func @transform_0(%arg0: i32) -> (i32, i32) {
    %c0_i32 = arith.constant 0 : i32
    %c0_i32_0 = arith.constant 0 : i32
    return %arg0, %c0_i32 : i32, i32
  }
  func.func @transform_1(%arg0: i32) -> (i32, i32) {
    %c0_i32 = arith.constant 0 : i32
    %c0_i32_0 = arith.constant 0 : i32
    return %arg0, %c0_i32 : i32, i32
  }
  func.func @transform_2(%arg0: i32) -> (i32, i32) {
    %c0_i32 = arith.constant 0 : i32
    %c0_i32_0 = arith.constant 0 : i32
    %c0_i32_1 = arith.constant 0 : i32
    return %c0_i32, %c0_i32_0 : i32, i32
  }
  func.func @transform_3(%arg0: i32) -> (i32, i32) {
    %c0_i32 = arith.constant 0 : i32
    %c0_i32_0 = arith.constant 0 : i32
    %c0_i32_1 = arith.constant 0 : i32
    return %c0_i32, %c0_i32_0 : i32, i32
  }
  func.func @transform_4(%arg0: i32) -> (i32, i32) {
    %c0_i32 = arith.constant 0 : i32
    %c0_i32_0 = arith.constant 0 : i32
    %c0_i32_1 = arith.constant 0 : i32
    return %c0_i32, %c0_i32_0 : i32, i32
  }
  func.func @transform_5(%arg0: i32) -> (i32, i32) {
    %c0_i32 = arith.constant 0 : i32
    %c0_i32_0 = arith.constant 0 : i32
    %c0_i32_1 = arith.constant 0 : i32
    return %c0_i32, %c0_i32_0 : i32, i32
  }
  func.func @transform_6(%arg0: i32) -> (i32, i32) {
    %c0_i32 = arith.constant 0 : i32
    %c0_i32_0 = arith.constant 0 : i32
    return %arg0, %c0_i32 : i32, i32
  }
}

</mosaic_0001>

<llo_original>
// kernel: tpu_custom_call.1
$region0: #{tpu_custom_call.1}
  #allocation0 [shape = 'u32[]', space=smem, size = 0x4, offset = 0x4, fixed_abs, tag = 'smem constant byte address 0x4 - core index']
  #allocation1 [shape = 'u32[144,128]{1,0:T(1,128)}', space=vmem, size = 0x12000, scoped, tag = 'internal scratch']
  %s0 = inlined_call_operand.vmem [shape: s32[256,1], index: 0, kind: input, shape index: {}]
  %s1 = inlined_call_operand.vmem [shape: s32[256,1], index: 1, kind: input, shape index: {}]
  %s2 = inlined_call_operand.vmem [shape: f32[512,128], index: 2, kind: input, shape index: {}]
  %s3 = inlined_call_operand.hbm [shape: f32[32,128], index: 3, kind: input, shape index: {}]
  %s4 = inlined_call_operand.vmem [shape: f32[1,128], index: 4, kind: input, shape index: {}]
  %s5 = inlined_call_operand.vmem [shape: f32[1,128], index: 5, kind: input, shape index: {}]
  %s6 = inlined_call_operand.hbm [shape: f32[256,128], index: 6, kind: output, shape index: {}]
  %s7 = sld [smem:[#allocation0]]
  $region38: #{tpu_custom_call.1} parent=0
    _
  %s9 = ssub.s32 1, %s7
  %s10 = scalar_select 0, %s9, %s7
  $region1: #{tpu_custom_call.1} parent=0
    #allocation2 [shape = 'u8[16384]{0}', space=vmem, size = 0x4000, scoped, tag = 'input window, operand 3, single buffered']
    #allocation3 [shape = 's32[1]{0}', space=sflag, size = 0x4, scoped, tag = 'scoped memory for tpu_custom_call.1']
    #allocation4 [shape = 's32[1]{0}', space=sflag, size = 0x4, scoped, tag = 'scoped memory for tpu_custom_call.1']
    #allocation5 [shape = 'u8[131072]{0}', space=vmem, size = 0x20000, scoped, tag = 'output window, operand 0, single buffered']
    %11 = vsyncpa [#allocation3], 0
    %12 = vsyncpa [#allocation4], 0
    // Predicated region
    $region2: #{tpu_custom_call.1} parent=1 // pred_check
      _
    $region3: #{tpu_custom_call.1} parent=1 // pred_check_branch
      %14 = sbr.rel (0) target = $region5
    $region4: #{tpu_custom_call.1} parent=1 // pred_region
      _
    $region5: #{tpu_custom_call.1} parent=1 // pred_fallthru
      _
    // Predicated region
    $region6: #{tpu_custom_call.1} parent=1 // pred_check
      _
    $region7: #{tpu_custom_call.1} parent=1 // pred_check_branch
      %16 = sbr.rel (0) target = $region9
    $region8: #{tpu_custom_call.1} parent=1 // pred_region
      _
    $region9: #{tpu_custom_call.1} parent=1 // pred_fallthru
      _
    // Predicated region
    $region10: #{tpu_custom_call.1} parent=1 // pred_check
      _
    $region11: #{tpu_custom_call.1} parent=1 // pred_check_branch
      %18 = sbr.rel (0) target = $region13
    $region12: #{tpu_custom_call.1} parent=1 // pred_region
      _
    $region13: #{tpu_custom_call.1} parent=1 // pred_fallthru
      _
    // Predicated region
    $region14: #{tpu_custom_call.1} parent=1 // pred_check
      _
    $region15: #{tpu_custom_call.1} parent=1 // pred_check_branch
      %20 = sbr.rel (0) target = $region17
    $region16: #{tpu_custom_call.1} parent=1 // pred_region
      %s22 = ssub.s32 512, 512
      %23 = vsyncadd [#allocation3], %s22
      %s24 = sshll.u32 [#allocation2], 4
      %s25 = int_to_ptr.vmem [resolvable:$true] %s24
      %30 = dma.hbm_to_vmem [thread:$0]  %s3, 512, %s25, [#allocation3], 128, 128, 8
    $region17: #{tpu_custom_call.1} parent=1 // pred_fallthru
      _
    // Predicated region
    $region18: #{tpu_custom_call.1} parent=1 // pred_check
      _
    $region19: #{tpu_custom_call.1} parent=1 // pred_check_branch
      %32 = sbr.rel (0) target = $region21
    $region20: #{tpu_custom_call.1} parent=1 // pred_region
      _
    $region21: #{tpu_custom_call.1} parent=1 // pred_fallthru
      _
    // Predicated region
    $region22: #{tpu_custom_call.1} parent=1 // pred_check
      _
    $region23: #{tpu_custom_call.1} parent=1 // pred_check_branch
      %34 = sbr.rel (0) target = $region25
    $region24: #{tpu_custom_call.1} parent=1 // pred_region
      _
    $region25: #{tpu_custom_call.1} parent=1 // pred_fallthru
      _
    // Predicated region
    $region26: #{tpu_custom_call.1} parent=1 // pred_check
      _
    $region27: #{tpu_custom_call.1} parent=1 // pred_check_branch
      %36 = sbr.rel (0) target = $region29
    $region28: #{tpu_custom_call.1} parent=1 // pred_region
      %37 = dma.done [#allocation3], 512
    $region29: #{tpu_custom_call.1} parent=1 // pred_fallthru
      _
    %v38 = vlaneseq
    %v39 = vand.u32 %v38, 127
    %v40 = vadd.s32 %v39, 128
    %v41 = vadd.s32 %v39, 256
    %v42 = vadd.s32 %v39, 384
    %v43 = vld [vmem:[%s4] sm:$0x1]
    %v44 = vld [vmem:[%s5] sm:$0x1]
    %v45 = vld [vmem:[%s2] sm:$0xff]
    %v46 = vld [vmem:[%s2 + $0x8] sm:$0xff]
    %v47 = vld [vmem:[%s2 + $0x10] sm:$0xff]
    %v48 = vld [vmem:[%s2 + $0x18] sm:$0xff]
    %v49 = vld [vmem:[%s2 + $0x20] sm:$0xff]
    %v50 = vld [vmem:[%s2 + $0x28] sm:$0xff]
    %v51 = vld [vmem:[%s2 + $0x30] sm:$0xff]
    %v52 = vld [vmem:[%s2 + $0x38] sm:$0xff]
    %v53 = vld [vmem:[%s2 + $0x40] sm:$0xff]
    %v54 = vld [vmem:[%s2 + $0x48] sm:$0xff]
    %v55 = vld [vmem:[%s2 + $0x50] sm:$0xff]
    %v56 = vld [vmem:[%s2 + $0x58] sm:$0xff]
    %v57 = vld [vmem:[%s2 + $0x60] sm:$0xff]
    %v58 = vld [vmem:[%s2 + $0x68] sm:$0xff]
    %v59 = vld [vmem:[%s2 + $0x70] sm:$0xff]
    %v60 = vld [vmem:[%s2 + $0x78] sm:$0xff]
    %v61 = vld [vmem:[%s2 + $0x80] sm:$0xff]
    %v62 = vld [vmem:[%s2 + $0x88] sm:$0xff]
    %v63 = vld [vmem:[%s2 + $0x90] sm:$0xff]
    %v64 = vld [vmem:[%s2 + $0x98] sm:$0xff]
    %v65 = vld [vmem:[%s2 + $0xa0] sm:$0xff]
    %v66 = vld [vmem:[%s2 + $0xa8] sm:$0xff]
    %v67 = vld [vmem:[%s2 + $0xb0] sm:$0xff]
    %v68 = vld [vmem:[%s2 + $0xb8] sm:$0xff]
    %v69 = vld [vmem:[%s2 + $0xc0] sm:$0xff]
    %v70 = vld [vmem:[%s2 + $0xc8] sm:$0xff]
    %v71 = vld [vmem:[%s2 + $0xd0] sm:$0xff]
    %v72 = vld [vmem:[%s2 + $0xd8] sm:$0xff]
    %v73 = vld [vmem:[%s2 + $0xe0] sm:$0xff]
    %v74 = vld [vmem:[%s2 + $0xe8] sm:$0xff]
    %v75 = vld [vmem:[%s2 + $0xf0] sm:$0xff]
    %v76 = vld [vmem:[%s2 + $0xf8] sm:$0xff]
    %v77 = vld [vmem:[%s2 + $0x100] sm:$0xff]
    %v78 = vld [vmem:[%s2 + $0x108] sm:$0xff]
    %v79 = vld [vmem:[%s2 + $0x110] sm:$0xff]
    %v80 = vld [vmem:[%s2 + $0x118] sm:$0xff]
    %v81 = vld [vmem:[%s2 + $0x120] sm:$0xff]
    %v82 = vld [vmem:[%s2 + $0x128] sm:$0xff]
    %v83 = vld [vmem:[%s2 + $0x130] sm:$0xff]
    %v84 = vld [vmem:[%s2 + $0x138] sm:$0xff]
    %v85 = vld [vmem:[%s2 + $0x140] sm:$0xff]
    %v86 = vld [vmem:[%s2 + $0x148] sm:$0xff]
    %v87 = vld [vmem:[%s2 + $0x150] sm:$0xff]
    %v88 = vld [vmem:[%s2 + $0x158] sm:$0xff]
    %v89 = vld [vmem:[%s2 + $0x160] sm:$0xff]
    %v90 = vld [vmem:[%s2 + $0x168] sm:$0xff]
    %v91 = vld [vmem:[%s2 + $0x170] sm:$0xff]
    %v92 = vld [vmem:[%s2 + $0x178] sm:$0xff]
    %v93 = vld [vmem:[%s2 + $0x180] sm:$0xff]
    %v94 = vld [vmem:[%s2 + $0x188] sm:$0xff]
    %v95 = vld [vmem:[%s2 + $0x190] sm:$0xff]
    %v96 = vld [vmem:[%s2 + $0x198] sm:$0xff]
    %v97 = vld [vmem:[%s2 + $0x1a0] sm:$0xff]
    %v98 = vld [vmem:[%s2 + $0x1a8] sm:$0xff]
    %v99 = vld [vmem:[%s2 + $0x1b0] sm:$0xff]
    %v100 = vld [vmem:[%s2 + $0x1b8] sm:$0xff]
    %v101 = vld [vmem:[%s2 + $0x1c0] sm:$0xff]
    %v102 = vld [vmem:[%s2 + $0x1c8] sm:$0xff]
    %v103 = vld [vmem:[%s2 + $0x1d0] sm:$0xff]
    %v104 = vld [vmem:[%s2 + $0x1d8] sm:$0xff]
    %v105 = vld [vmem:[%s2 + $0x1e0] sm:$0xff]
    %v106 = vld [vmem:[%s2 + $0x1e8] sm:$0xff]
    %v107 = vld [vmem:[%s2 + $0x1f0] sm:$0xff]
    %v108 = vld [vmem:[%s2 + $0x1f8] sm:$0xff]
    %v109 = vld [vmem:[#allocation2] sm:$0xff]
    %v110 = vld [vmem:[#allocation2 + $0x8] sm:$0xff]
    %v111 = vld [vmem:[#allocation2 + $0x10] sm:$0xff]
    %v112 = vld [vmem:[#allocation2 + $0x18] sm:$0xff]
    %v113 = vld [vmem:[%s0] sm:$0xff]
    %v114 = vld [vmem:[%s0 + $0x8] sm:$0xff]
    %v115 = vld [vmem:[%s0 + $0x10] sm:$0xff]
    %v116 = vld [vmem:[%s0 + $0x18] sm:$0xff]
    %v117 = vld [vmem:[%s0 + $0x20] sm:$0xff]
    %v118 = vld [vmem:[%s0 + $0x28] sm:$0xff]
    %v119 = vld [vmem:[%s0 + $0x30] sm:$0xff]
    %v120 = vld [vmem:[%s0 + $0x38] sm:$0xff]
    %v121 = vld [vmem:[%s1] sm:$0xff]
    %v122 = vld [vmem:[%s1 + $0x8] sm:$0xff]
    %v123 = vld [vmem:[%s1 + $0x10] sm:$0xff]
    %v124 = vld [vmem:[%s1 + $0x18] sm:$0xff]
    %v125 = vld [vmem:[%s1 + $0x20] sm:$0xff]
    %v126 = vld [vmem:[%s1 + $0x28] sm:$0xff]
    %v127 = vld [vmem:[%s1 + $0x30] sm:$0xff]
    %v128 = vld [vmem:[%s1 + $0x38] sm:$0xff]
    %129 = vset.pattern.permute.xlu0 0
    %130 = vperm.xlu0 %129, %v113
    %v131 = vpop.permute.xlu0 %130
    %132 = vset.pattern.permute.xlu0 0
    %133 = vperm.xlu0 %132, %v114
    %v134 = vpop.permute.xlu0 %133
    %135 = vset.pattern.permute.xlu0 0
    %136 = vperm.xlu0 %135, %v115
    %v137 = vpop.permute.xlu0 %136
    %138 = vset.pattern.permute.xlu0 0
    %139 = vperm.xlu0 %138, %v116
    %v140 = vpop.permute.xlu0 %139
    %141 = vset.pattern.permute.xlu0 0
    %142 = vperm.xlu0 %141, %v117
    %v143 = vpop.permute.xlu0 %142
    %144 = vset.pattern.permute.xlu0 0
    %145 = vperm.xlu0 %144, %v118
    %v146 = vpop.permute.xlu0 %145
    %147 = vset.pattern.permute.xlu0 0
    %148 = vperm.xlu0 %147, %v119
    %v149 = vpop.permute.xlu0 %148
    %150 = vset.pattern.permute.xlu0 0
    %151 = vperm.xlu0 %150, %v120
    %v152 = vpop.permute.xlu0 %151
    %vm153 = vcmp.eq.s32.totalorder %v131, %v39
    %vm154 = vcmp.eq.s32.totalorder %v131, %v40
    %vm155 = vcmp.eq.s32.totalorder %v131, %v41
    %vm156 = vcmp.eq.s32.totalorder %v131, %v42
    %vm157 = vcmp.eq.s32.totalorder %v134, %v39
    %vm158 = vcmp.eq.s32.totalorder %v134, %v40
    %vm159 = vcmp.eq.s32.totalorder %v134, %v41
    %vm160 = vcmp.eq.s32.totalorder %v134, %v42
    %vm161 = vcmp.eq.s32.totalorder %v137, %v39
    %vm162 = vcmp.eq.s32.totalorder %v137, %v40
    %vm163 = vcmp.eq.s32.totalorder %v137, %v41
    %vm164 = vcmp.eq.s32.totalorder %v137, %v42
    %vm165 = vcmp.eq.s32.totalorder %v140, %v39
    %vm166 = vcmp.eq.s32.totalorder %v140, %v40
    %vm167 = vcmp.eq.s32.totalorder %v140, %v41
    %vm168 = vcmp.eq.s32.totalorder %v140, %v42
    %vm169 = vcmp.eq.s32.totalorder %v143, %v39
    %vm170 = vcmp.eq.s32.totalorder %v143, %v40
    %vm171 = vcmp.eq.s32.totalorder %v143, %v41
    %vm172 = vcmp.eq.s32.totalorder %v143, %v42
    %vm173 = vcmp.eq.s32.totalorder %v146, %v39
    %vm174 = vcmp.eq.s32.totalorder %v146, %v40
    %vm175 = vcmp.eq.s32.totalorder %v146, %v41
    %vm176 = vcmp.eq.s32.totalorder %v146, %v42
    %vm177 = vcmp.eq.s32.totalorder %v149, %v39
    %vm178 = vcmp.eq.s32.totalorder %v149, %v40
    %vm179 = vcmp.eq.s32.totalorder %v149, %v41
    %vm180 = vcmp.eq.s32.totalorder %v149, %v42
    %vm181 = vcmp.eq.s32.totalorder %v152, %v39
    %vm182 = vcmp.eq.s32.totalorder %v152, %v40
    %vm183 = vcmp.eq.s32.totalorder %v152, %v41
    %vm184 = vcmp.eq.s32.totalorder %v152, %v42
    %v185 = vsel %vm153, 1, 0
    %v186 = vsel %vm154, 1, 0
    %v187 = vsel %vm155, 1, 0
    %v188 = vsel %vm156, 1, 0
    %v189 = vsel %vm157, 1, 0
    %v190 = vsel %vm158, 1, 0
    %v191 = vsel %vm159, 1, 0
    %v192 = vsel %vm160, 1, 0
    %v193 = vsel %vm161, 1, 0
    %v194 = vsel %vm162, 1, 0
    %v195 = vsel %vm163, 1, 0
    %v196 = vsel %vm164, 1, 0
    %v197 = vsel %vm165, 1, 0
    %v198 = vsel %vm166, 1, 0
    %v199 = vsel %vm167, 1, 0
    %v200 = vsel %vm168, 1, 0
    %v201 = vsel %vm169, 1, 0
    %v202 = vsel %vm170, 1, 0
    %v203 = vsel %vm171, 1, 0
    %v204 = vsel %vm172, 1, 0
    %v205 = vsel %vm173, 1, 0
    %v206 = vsel %vm174, 1, 0
    %v207 = vsel %vm175, 1, 0
    %v208 = vsel %vm176, 1, 0
    %v209 = vsel %vm177, 1, 0
    %v210 = vsel %vm178, 1, 0
    %v211 = vsel %vm179, 1, 0
    %v212 = vsel %vm180, 1, 0
    %v213 = vsel %vm181, 1, 0
    %v214 = vsel %vm182, 1, 0
    %v215 = vsel %vm183, 1, 0
    %v216 = vsel %vm184, 1, 0
    %v217 = vcvt.s32.f32 %v185
    %v218 = vcvt.s32.f32 %v186
    %v219 = vcvt.s32.f32 %v187
    %v220 = vcvt.s32.f32 %v188
    %v221 = vcvt.s32.f32 %v189
    %v222 = vcvt.s32.f32 %v190
    %v223 = vcvt.s32.f32 %v191
    %v224 = vcvt.s32.f32 %v192
    %v225 = vcvt.s32.f32 %v193
    %v226 = vcvt.s32.f32 %v194
    %v227 = vcvt.s32.f32 %v195
    %v228 = vcvt.s32.f32 %v196
    %v229 = vcvt.s32.f32 %v197
    %v230 = vcvt.s32.f32 %v198
    %v231 = vcvt.s32.f32 %v199
    %v232 = vcvt.s32.f32 %v200
    %v233 = vcvt.s32.f32 %v201
    %v234 = vcvt.s32.f32 %v202
    %v235 = vcvt.s32.f32 %v203
    %v236 = vcvt.s32.f32 %v204
    %v237 = vcvt.s32.f32 %v205
    %v238 = vcvt.s32.f32 %v206
    %v239 = vcvt.s32.f32 %v207
    %v240 = vcvt.s32.f32 %v208
    %v241 = vcvt.s32.f32 %v209
    %v242 = vcvt.s32.f32 %v210
    %v243 = vcvt.s32.f32 %v211
    %v244 = vcvt.s32.f32 %v212
    %v245 = vcvt.s32.f32 %v213
    %v246 = vcvt.s32.f32 %v214
    %v247 = vcvt.s32.f32 %v215
    %v248 = vcvt.s32.f32 %v216
    %249 = vset.pattern.permute.xlu0 0
    %250 = vperm.xlu0 %249, %v121
    %v251 = vpop.permute.xlu0 %250
    %252 = vset.pattern.permute.xlu0 0
    %253 = vperm.xlu0 %252, %v122
    %v254 = vpop.permute.xlu0 %253
    %255 = vset.pattern.permute.xlu0 0
    %256 = vperm.xlu0 %255, %v123
    %v257 = vpop.permute.xlu0 %256
    %258 = vset.pattern.permute.xlu0 0
    %259 = vperm.xlu0 %258, %v124
    %v260 = vpop.permute.xlu0 %259
    %261 = vset.pattern.permute.xlu0 0
    %262 = vperm.xlu0 %261, %v125
    %v263 = vpop.permute.xlu0 %262
    %264 = vset.pattern.permute.xlu0 0
    %265 = vperm.xlu0 %264, %v126
    %v266 = vpop.permute.xlu0 %265
    %267 = vset.pattern.permute.xlu0 0
    %268 = vperm.xlu0 %267, %v127
    %v269 = vpop.permute.xlu0 %268
    %270 = vset.pattern.permute.xlu0 0
    %271 = vperm.xlu0 %270, %v128
    %v272 = vpop.permute.xlu0 %271
    %vm273 = vcmp.eq.s32.totalorder %v251, %v39
    %vm274 = vcmp.eq.s32.totalorder %v254, %v39
    %vm275 = vcmp.eq.s32.totalorder %v257, %v39
    %vm276 = vcmp.eq.s32.totalorder %v260, %v39
    %vm277 = vcmp.eq.s32.totalorder %v263, %v39
    %vm278 = vcmp.eq.s32.totalorder %v266, %v39
    %vm279 = vcmp.eq.s32.totalorder %v269, %v39
    %vm280 = vcmp.eq.s32.totalorder %v272, %v39
    %v281 = vsel %vm273, 1, 0
    %v282 = vsel %vm274, 1, 0
    %v283 = vsel %vm275, 1, 0
    %v284 = vsel %vm276, 1, 0
    %v285 = vsel %vm277, 1, 0
    %v286 = vsel %vm278, 1, 0
    %v287 = vsel %vm279, 1, 0
    %v288 = vsel %vm280, 1, 0
    %v289 = vcvt.s32.f32 %v281
    %v290 = vcvt.s32.f32 %v282
    %v291 = vcvt.s32.f32 %v283
    %v292 = vcvt.s32.f32 %v284
    %v293 = vcvt.s32.f32 %v285
    %v294 = vcvt.s32.f32 %v286
    %v295 = vcvt.s32.f32 %v287
    %v296 = vcvt.s32.f32 %v288
    %vm297 = vcmask 261120
    %v299 = vsel %vm297, %v289, 0
    %v302 = vsel %vm297, %v290, 0
    %v305 = vsel %vm297, %v291, 0
    %v308 = vsel %vm297, %v292, 0
    %v311 = vsel %vm297, %v293, 0
    %v314 = vsel %vm297, %v294, 0
    %v317 = vsel %vm297, %v295, 0
    %v320 = vsel %vm297, %v296, 0
    %322 = vmatprep.subr.mxu0 0.0
    %323 = vmatpush1.msra.mxu0 0.0
    %324 = vmatprep.subr.mxu0 0.0
    %325 = vmatpush1.msra.mxu0 0.0
    %326 = vmatprep.subr.mxu0 0.0
    %327 = vmatpush1.msra.mxu0 0.0
    %328 = vmatprep.subr.mxu0 0.0
    %329 = vmatpush1.msra.mxu0 0.0
    %330 = vmatprep.subr.mxu0 0.0
    %331 = vmatpush1.msra.mxu0 0.0
    %332 = vmatprep.subr.mxu0 0.0
    %333 = vmatpush1.msra.mxu0 0.0
    %334 = vmatprep.subr.mxu0 0.0
    %335 = vmatpush1.msra.mxu0 0.0
    %336 = vmatprep.subr.mxu0 0.0
    %337 = vmatpush1.msra.mxu0 0.0
    %338 = vmatprep.subr.mxu0 0.0
    %339 = vmatpush1.msra.mxu0 0.0
    %340 = vmatprep.subr.mxu0 0.0
    %341 = vmatpush1.msra.mxu0 0.0
    %342 = vmatprep.subr.mxu0 0.0
    %343 = vmatpush1.msra.mxu0 0.0
    %344 = vmatprep.subr.mxu0 0.0
    %345 = vmatpush1.msra.mxu0 0.0
    %346 = vmatprep.subr.mxu0 0.0
    %347 = vmatpush1.msra.mxu0 %v112
    %348 = vmatprep.subr.mxu0 0.0
    %349 = vmatpush1.msra.mxu0 %v111
    %350 = vmatprep.subr.mxu0 0.0
    %351 = vmatpush1.msra.mxu0 %v110
    %352 = vmatprep.subr.mxu0 0.0
    %353 = vmatpush1.msra.mxu0 %v109
    %354 = vmatprep.subr.mxu0 0.0
    %355 = vmatpush2.msra.mxu0 0.0
    %356 = vmatprep.subr.mxu0 0.0
    %357 = vmatpush2.msra.mxu0 0.0
    %358 = vmatprep.subr.mxu0 0.0
    %359 = vmatpush2.msra.mxu0 0.0
    %360 = vmatprep.subr.mxu0 0.0
    %361 = vmatpush2.msra.mxu0 0.0
    %362 = vmatprep.subr.mxu0 0.0
    %363 = vmatpush2.msra.mxu0 0.0
    %364 = vmatprep.subr.mxu0 0.0
    %365 = vmatpush2.msra.mxu0 0.0
    %366 = vmatprep.subr.mxu0 0.0
    %367 = vmatpush2.msra.mxu0 0.0
    %368 = vmatprep.subr.mxu0 0.0
    %369 = vmatpush2.msra.mxu0 0.0
    %370 = vmatprep.subr.mxu0 0.0
    %371 = vmatpush2.msra.mxu0 0.0
    %372 = vmatprep.subr.mxu0 0.0
    %373 = vmatpush2.msra.mxu0 0.0
    %374 = vmatprep.subr.mxu0 0.0
    %375 = vmatpush2.msra.mxu0 0.0
    %376 = vmatprep.subr.mxu0 0.0
    %377 = vmatpush2.msra.mxu0 0.0
    %378 = vmatprep.subr.mxu0 0.0
    %379 = vmatpush2.msra.mxu0 0.0
    %380 = vmatprep.subr.mxu0 0.0
    %381 = vmatpush2.msra.mxu0 0.0
    %382 = vmatprep.subr.mxu0 0.0
    %383 = vmatpush2.msra.mxu0 0.0
    %384 = vmatprep.subr.mxu0 0.0
    %385 = vmatpush2.msra.mxu0 0.0
    %386 = vmatprep.mubr.f32.mxu0 0.0
    %387 = vmatmul.mubr.f32.gmra.mxu0 %v299
    %v388 = vpop.f32.mrf.mxu0
    %v389 = vadd.f32 0.0, %v388
    %v390 = vpop.f32.mrf.mxu0
    %391 = vmatprep.mubr.f32.mxu0 0.0
    %392 = vmatmul.mubr.f32.gmra.mxu0 %v302
    %v393 = vpop.f32.mrf.mxu0
    %v394 = vadd.f32 0.0, %v393
    %v395 = vpop.f32.mrf.mxu0
    %396 = vmatprep.mubr.f32.mxu0 0.0
    %397 = vmatmul.mubr.f32.gmra.mxu0 %v305
    %v398 = vpop.f32.mrf.mxu0
    %v399 = vadd.f32 0.0, %v398
    %v400 = vpop.f32.mrf.mxu0
    %401 = vmatprep.mubr.f32.mxu0 0.0
    %402 = vmatmul.mubr.f32.gmra.mxu0 %v308
    %v403 = vpop.f32.mrf.mxu0
    %v404 = vadd.f32 0.0, %v403
    %v405 = vpop.f32.mrf.mxu0
    %406 = vmatprep.mubr.f32.mxu0 0.0
    %407 = vmatmul.mubr.f32.gmra.mxu0 %v311
    %v408 = vpop.f32.mrf.mxu0
    %v409 = vadd.f32 0.0, %v408
    %v410 = vpop.f32.mrf.mxu0
    %411 = vmatprep.mubr.f32.mxu0 0.0
    %412 = vmatmul.mubr.f32.gmra.mxu0 %v314
    %v413 = vpop.f32.mrf.mxu0
    %v414 = vadd.f32 0.0, %v413
    %v415 = vpop.f32.mrf.mxu0
    %416 = vmatprep.mubr.f32.mxu0 0.0
    %417 = vmatmul.mubr.f32.gmra.mxu0 %v317
    %v418 = vpop.f32.mrf.mxu0
    %v419 = vadd.f32 0.0, %v418
    %v420 = vpop.f32.mrf.mxu0
    %421 = vmatprep.mubr.f32.mxu0 0.0
    %422 = vmatmul.mubr.f32.gmra.mxu0 %v320
    %v423 = vpop.f32.mrf.mxu0
    %v424 = vadd.f32 0.0, %v423
    %v425 = vpop.f32.mrf.mxu0
    %426 = vdwg.mxu0
    %427 = vmatprep.subr.mxu0 0.0
    %428 = vmatpush1.msra.mxu0 %v60
    %429 = vmatprep.subr.mxu0 0.0
    %430 = vmatpush1.msra.mxu0 %v59
    %431 = vmatprep.subr.mxu0 0.0
    %432 = vmatpush1.msra.mxu0 %v58
    %433 = vmatprep.subr.mxu0 0.0
    %434 = vmatpush1.msra.mxu0 %v57
    %435 = vmatprep.subr.mxu0 0.0
    %436 = vmatpush1.msra.mxu0 %v56
    %437 = vmatprep.subr.mxu0 0.0
    %438 = vmatpush1.msra.mxu0 %v55
    %439 = vmatprep.subr.mxu0 0.0
    %440 = vmatpush1.msra.mxu0 %v54
    %441 = vmatprep.subr.mxu0 0.0
    %442 = vmatpush1.msra.mxu0 %v53
    %443 = vmatprep.subr.mxu0 0.0
    %444 = vmatpush1.msra.mxu0 %v52
    %445 = vmatprep.subr.mxu0 0.0
    %446 = vmatpush1.msra.mxu0 %v51
    %447 = vmatprep.subr.mxu0 0.0
    %448 = vmatpush1.msra.mxu0 %v50
    %449 = vmatprep.subr.mxu0 0.0
    %450 = vmatpush1.msra.mxu0 %v49
    %451 = vmatprep.subr.mxu0 0.0
    %452 = vmatpush1.msra.mxu0 %v48
    %453 = vmatprep.subr.mxu0 0.0
    %454 = vmatpush1.msra.mxu0 %v47
    %455 = vmatprep.subr.mxu0 0.0
    %456 = vmatpush1.msra.mxu0 %v46
    %457 = vmatprep.subr.mxu0 0.0
    %458 = vmatpush1.msra.mxu0 %v45
    %459 = vmatprep.subr.mxu0 0.0
    %460 = vmatpush2.msra.mxu0 %v76
    %461 = vmatprep.subr.mxu0 0.0
    %462 = vmatpush2.msra.mxu0 %v75
    %463 = vmatprep.subr.mxu0 0.0
    %464 = vmatpush2.msra.mxu0 %v74
    %465 = vmatprep.subr.mxu0 0.0
    %466 = vmatpush2.msra.mxu0 %v73
    %467 = vmatprep.subr.mxu0 0.0
    %468 = vmatpush2.msra.mxu0 %v72
    %469 = vmatprep.subr.mxu0 0.0
    %470 = vmatpush2.msra.mxu0 %v71
    %471 = vmatprep.subr.mxu0 0.0
    %472 = vmatpush2.msra.mxu0 %v70
    %473 = vmatprep.subr.mxu0 0.0
    %474 = vmatpush2.msra.mxu0 %v69
    %475 = vmatprep.subr.mxu0 0.0
    %476 = vmatpush2.msra.mxu0 %v68
    %477 = vmatprep.subr.mxu0 0.0
    %478 = vmatpush2.msra.mxu0 %v67
    %479 = vmatprep.subr.mxu0 0.0
    %480 = vmatpush2.msra.mxu0 %v66
    %481 = vmatprep.subr.mxu0 0.0
    %482 = vmatpush2.msra.mxu0 %v65
    %483 = vmatprep.subr.mxu0 0.0
    %484 = vmatpush2.msra.mxu0 %v64
    %485 = vmatprep.subr.mxu0 0.0
    %486 = vmatpush2.msra.mxu0 %v63
    %487 = vmatprep.subr.mxu0 0.0
    %488 = vmatpush2.msra.mxu0 %v62
    %489 = vmatprep.subr.mxu0 0.0
    %490 = vmatpush2.msra.mxu0 %v61
    %491 = vmatprep.mubr.f32.mxu0 %v218
    %492 = vmatmul.mubr.f32.gmra.mxu0 %v217
    %v493 = vpop.f32.mrf.mxu0
    %v494 = vadd.f32 %v389, %v493
    %v495 = vpop.f32.mrf.mxu0
    %496 = vmatprep.mubr.f32.mxu0 %v222
    %497 = vmatmul.mubr.f32.gmra.mxu0 %v221
    %v498 = vpop.f32.mrf.mxu0
    %v499 = vadd.f32 %v394, %v498
    %v500 = vpop.f32.mrf.mxu0
    %501 = vmatprep.mubr.f32.mxu0 %v226
    %502 = vmatmul.mubr.f32.gmra.mxu0 %v225
    %v503 = vpop.f32.mrf.mxu0
    %v504 = vadd.f32 %v399, %v503
    %v505 = vpop.f32.mrf.mxu0
    %506 = vmatprep.mubr.f32.mxu0 %v230
    %507 = vmatmul.mubr.f32.gmra.mxu0 %v229
    %v508 = vpop.f32.mrf.mxu0
    %v509 = vadd.f32 %v404, %v508
    %v510 = vpop.f32.mrf.mxu0
    %511 = vmatprep.mubr.f32.mxu0 %v234
    %512 = vmatmul.mubr.f32.gmra.mxu0 %v233
    %v513 = vpop.f32.mrf.mxu0
    %v514 = vadd.f32 %v409, %v513
    %v515 = vpop.f32.mrf.mxu0
    %516 = vmatprep.mubr.f32.mxu0 %v238
    %517 = vmatmul.mubr.f32.gmra.mxu0 %v237
    %v518 = vpop.f32.mrf.mxu0
    %v519 = vadd.f32 %v414, %v518
    %v520 = vpop.f32.mrf.mxu0
    %521 = vmatprep.mubr.f32.mxu0 %v242
    %522 = vmatmul.mubr.f32.gmra.mxu0 %v241
    %v523 = vpop.f32.mrf.mxu0
    %v524 = vadd.f32 %v419, %v523
    %v525 = vpop.f32.mrf.mxu0
    %526 = vmatprep.mubr.f32.mxu0 %v246
    %527 = vmatmul.mubr.f32.gmra.mxu0 %v245
    %v528 = vpop.f32.mrf.mxu0
    %v529 = vadd.f32 %v424, %v528
    %v530 = vpop.f32.mrf.mxu0
    %531 = vdwg.mxu0
    %532 = vmatprep.subr.mxu0 0.0
    %533 = vmatpush1.msra.mxu0 %v92
    %534 = vmatprep.subr.mxu0 0.0
    %535 = vmatpush1.msra.mxu0 %v91
    %536 = vmatprep.subr.mxu0 0.0
    %537 = vmatpush1.msra.mxu0 %v90
    %538 = vmatprep.subr.mxu0 0.0
    %539 = vmatpush1.msra.mxu0 %v89
    %540 = vmatprep.subr.mxu0 0.0
    %541 = vmatpush1.msra.mxu0 %v88
    %542 = vmatprep.subr.mxu0 0.0
    %543 = vmatpush1.msra.mxu0 %v87
    %544 = vmatprep.subr.mxu0 0.0
    %545 = vmatpush1.msra.mxu0 %v86
    %546 = vmatprep.subr.mxu0 0.0
    %547 = vmatpush1.msra.mxu0 %v85
    %548 = vmatprep.subr.mxu0 0.0
    %549 = vmatpush1.msra.mxu0 %v84
    %550 = vmatprep.subr.mxu0 0.0
    %551 = vmatpush1.msra.mxu0 %v83
    %552 = vmatprep.subr.mxu0 0.0
    %553 = vmatpush1.msra.mxu0 %v82
    %554 = vmatprep.subr.mxu0 0.0
    %555 = vmatpush1.msra.mxu0 %v81
    %556 = vmatprep.subr.mxu0 0.0
    %557 = vmatpush1.msra.mxu0 %v80
    %558 = vmatprep.subr.mxu0 0.0
    %559 = vmatpush1.msra.mxu0 %v79
    %560 = vmatprep.subr.mxu0 0.0
    %561 = vmatpush1.msra.mxu0 %v78
    %562 = vmatprep.subr.mxu0 0.0
    %563 = vmatpush1.msra.mxu0 %v77
    %564 = vmatprep.subr.mxu0 0.0
    %565 = vmatpush2.msra.mxu0 %v108
    %566 = vmatprep.subr.mxu0 0.0
    %567 = vmatpush2.msra.mxu0 %v107
    %568 = vmatprep.subr.mxu0 0.0
    %569 = vmatpush2.msra.mxu0 %v106
    %570 = vmatprep.subr.mxu0 0.0
    %571 = vmatpush2.msra.mxu0 %v105
    %572 = vmatprep.subr.mxu0 0.0
    %573 = vmatpush2.msra.mxu0 %v104
    %574 = vmatprep.subr.mxu0 0.0
    %575 = vmatpush2.msra.mxu0 %v103
    %576 = vmatprep.subr.mxu0 0.0
    %577 = vmatpush2.msra.mxu0 %v102
    %578 = vmatprep.subr.mxu0 0.0
    %579 = vmatpush2.msra.mxu0 %v101
    %580 = vmatprep.subr.mxu0 0.0
    %581 = vmatpush2.msra.mxu0 %v100
    %582 = vmatprep.subr.mxu0 0.0
    %583 = vmatpush2.msra.mxu0 %v99
    %584 = vmatprep.subr.mxu0 0.0
    %585 = vmatpush2.msra.mxu0 %v98
    %586 = vmatprep.subr.mxu0 0.0
    %587 = vmatpush2.msra.mxu0 %v97
    %588 = vmatprep.subr.mxu0 0.0
    %589 = vmatpush2.msra.mxu0 %v96
    %590 = vmatprep.subr.mxu0 0.0
    %591 = vmatpush2.msra.mxu0 %v95
    %592 = vmatprep.subr.mxu0 0.0
    %593 = vmatpush2.msra.mxu0 %v94
    %594 = vmatprep.subr.mxu0 0.0
    %595 = vmatpush2.msra.mxu0 %v93
    %596 = vmatprep.mubr.f32.mxu0 %v220
    %597 = vmatmul.mubr.f32.gmra.mxu0 %v219
    %v598 = vpop.f32.mrf.mxu0
    %v599 = vadd.f32 %v494, %v598
    %v600 = vpop.f32.mrf.mxu0
    %601 = vmatprep.mubr.f32.mxu0 %v224
    %602 = vmatmul.mubr.f32.gmra.mxu0 %v223
    %v603 = vpop.f32.mrf.mxu0
    %v604 = vadd.f32 %v499, %v603
    %v605 = vpop.f32.mrf.mxu0
    %606 = vmatprep.mubr.f32.mxu0 %v228
    %607 = vmatmul.mubr.f32.gmra.mxu0 %v227
    %v608 = vpop.f32.mrf.mxu0
    %v609 = vadd.f32 %v504, %v608
    %v610 = vpop.f32.mrf.mxu0
    %611 = vmatprep.mubr.f32.mxu0 %v232
    %612 = vmatmul.mubr.f32.gmra.mxu0 %v231
    %v613 = vpop.f32.mrf.mxu0
    %v614 = vadd.f32 %v509, %v613
    %v615 = vpop.f32.mrf.mxu0
    %616 = vmatprep.mubr.f32.mxu0 %v236
    %617 = vmatmul.mubr.f32.gmra.mxu0 %v235
    %v618 = vpop.f32.mrf.mxu0
    %v619 = vadd.f32 %v514, %v618
    %v620 = vpop.f32.mrf.mxu0
    %621 = vmatprep.mubr.f32.mxu0 %v240
    %622 = vmatmul.mubr.f32.gmra.mxu0 %v239
    %v623 = vpop.f32.mrf.mxu0
    %v624 = vadd.f32 %v519, %v623
    %v625 = vpop.f32.mrf.mxu0
    %626 = vmatprep.mubr.f32.mxu0 %v244
    %627 = vmatmul.mubr.f32.gmra.mxu0 %v243
    %v628 = vpop.f32.mrf.mxu0
    %v629 = vadd.f32 %v524, %v628
    %v630 = vpop.f32.mrf.mxu0
    %631 = vmatprep.mubr.f32.mxu0 %v248
    %632 = vmatmul.mubr.f32.gmra.mxu0 %v247
    %v633 = vpop.f32.mrf.mxu0
    %v634 = vadd.f32 %v529, %v633
    %v635 = vpop.f32.mrf.mxu0
    %636 = vdwg.mxu0
    %637 = vadd.xlane.f32.xlu0 %v599
    %v638 = vpop.xlane.xlu0 %637
    %639 = vadd.xlane.f32.xlu0 %v604
    %v640 = vpop.xlane.xlu0 %639
    %641 = vadd.xlane.f32.xlu0 %v609
    %v642 = vpop.xlane.xlu0 %641
    %643 = vadd.xlane.f32.xlu0 %v614
    %v644 = vpop.xlane.xlu0 %643
    %645 = vadd.xlane.f32.xlu0 %v619
    %v646 = vpop.xlane.xlu0 %645
    %647 = vadd.xlane.f32.xlu0 %v624
    %v648 = vpop.xlane.xlu0 %647
    %649 = vadd.xlane.f32.xlu0 %v629
    %v650 = vpop.xlane.xlu0 %649
    %651 = vadd.xlane.f32.xlu0 %v634
    %v652 = vpop.xlane.xlu0 %651
    %v653 = vrcp.pop 128.0
    %v654 = vmul.f32 %v638, %v653
    %v655 = vmul.f32 %v640, %v653
    %v656 = vmul.f32 %v642, %v653
    %v657 = vmul.f32 %v644, %v653
    %v658 = vmul.f32 %v646, %v653
    %v659 = vmul.f32 %v648, %v653
    %v660 = vmul.f32 %v650, %v653
    %v661 = vmul.f32 %v652, %v653
    %v662 = vmul.f32 %v599, %v599
    %v663 = vmul.f32 %v604, %v604
    %v664 = vmul.f32 %v609, %v609
    %v665 = vmul.f32 %v614, %v614
    %v666 = vmul.f32 %v619, %v619
    %v667 = vmul.f32 %v624, %v624
    %v668 = vmul.f32 %v629, %v629
    %v669 = vmul.f32 %v634, %v634
    %670 = vadd.xlane.f32.xlu0 %v662
    %v671 = vpop.xlane.xlu0 %670
    %672 = vadd.xlane.f32.xlu0 %v663
    %v673 = vpop.xlane.xlu0 %672
    %674 = vadd.xlane.f32.xlu0 %v664
    %v675 = vpop.xlane.xlu0 %674
    %676 = vadd.xlane.f32.xlu0 %v665
    %v677 = vpop.xlane.xlu0 %676
    %678 = vadd.xlane.f32.xlu0 %v666
    %v679 = vpop.xlane.xlu0 %678
    %680 = vadd.xlane.f32.xlu0 %v667
    %v681 = vpop.xlane.xlu0 %680
    %682 = vadd.xlane.f32.xlu0 %v668
    %v683 = vpop.xlane.xlu0 %682
    %684 = vadd.xlane.f32.xlu0 %v669
    %v685 = vpop.xlane.xlu0 %684
    %v686 = vmul.f32 %v671, %v653
    %v687 = vmul.f32 %v673, %v653
    %v688 = vmul.f32 %v675, %v653
    %v689 = vmul.f32 %v677, %v653
    %v690 = vmul.f32 %v679, %v653
    %v691 = vmul.f32 %v681, %v653
    %v692 = vmul.f32 %v683, %v653
    %v693 = vmul.f32 %v685, %v653
    %v694 = vmul.f32 %v654, %v654
    %v695 = vmul.f32 %v655, %v655
    %v696 = vmul.f32 %v656, %v656
    %v697 = vmul.f32 %v657, %v657
    %v698 = vmul.f32 %v658, %v658
    %v699 = vmul.f32 %v659, %v659
    %v700 = vmul.f32 %v660, %v660
    %v701 = vmul.f32 %v661, %v661
    %v702 = vsub.f32 %v686, %v694
    %v703 = vsub.f32 %v687, %v695
    %v704 = vsub.f32 %v688, %v696
    %v705 = vsub.f32 %v689, %v697
    %v706 = vsub.f32 %v690, %v698
    %v707 = vsub.f32 %v691, %v699
    %v708 = vsub.f32 %v692, %v700
    %v709 = vsub.f32 %v693, %v701
    %v710 = vmax.f32 %v702, 0.0
    %v711 = vmax.f32 %v703, 0.0
    %v712 = vmax.f32 %v704, 0.0
    %v713 = vmax.f32 %v705, 0.0
    %v714 = vmax.f32 %v706, 0.0
    %v715 = vmax.f32 %v707, 0.0
    %v716 = vmax.f32 %v708, 0.0
    %v717 = vmax.f32 %v709, 0.0
    %v718 = vadd.f32 %v710, 1e-12
    %v719 = vadd.f32 %v711, 1e-12
    %v720 = vadd.f32 %v712, 1e-12
    %v721 = vadd.f32 %v713, 1e-12
    %v722 = vadd.f32 %v714, 1e-12
    %v723 = vadd.f32 %v715, 1e-12
    %v724 = vadd.f32 %v716, 1e-12
    %v725 = vadd.f32 %v717, 1e-12
    %v726 = vrsqrt.pop %v718
    %v727 = vrsqrt.pop %v719
    %v728 = vrsqrt.pop %v720
    %v729 = vrsqrt.pop %v721
    %v730 = vrsqrt.pop %v722
    %v731 = vrsqrt.pop %v723
    %v732 = vrsqrt.pop %v724
    %v733 = vrsqrt.pop %v725
    %v734 = vsub.f32 %v599, %v654
    %v735 = vsub.f32 %v604, %v655
    %v736 = vsub.f32 %v609, %v656
    %v737 = vsub.f32 %v614, %v657
    %v738 = vsub.f32 %v619, %v658
    %v739 = vsub.f32 %v624, %v659
    %v740 = vsub.f32 %v629, %v660
    %v741 = vsub.f32 %v634, %v661
    %v742 = vmul.f32 %v734, %v726
    %v743 = vmul.f32 %v735, %v727
    %v744 = vmul.f32 %v736, %v728
    %v745 = vmul.f32 %v737, %v729
    %v746 = vmul.f32 %v738, %v730
    %v747 = vmul.f32 %v739, %v731
    %v748 = vmul.f32 %v740, %v732
    %v749 = vmul.f32 %v741, %v733
    %v751 = vlaneseq
    %v752 = vshrl.u32 %v751, 7
    %v753 = vsub.s32 0, %v752
    %v754 = vrot.slane %v43, %v753
    %v756 = vmul.f32 %v742, %v754
    %v757 = vmul.f32 %v743, %v754
    %v758 = vmul.f32 %v744, %v754
    %v759 = vmul.f32 %v745, %v754
    %v760 = vmul.f32 %v746, %v754
    %v761 = vmul.f32 %v747, %v754
    %v762 = vmul.f32 %v748, %v754
    %v763 = vmul.f32 %v749, %v754
    %v765 = vlaneseq
    %v766 = vshrl.u32 %v765, 7
    %v767 = vsub.s32 0, %v766
    %v768 = vrot.slane %v44, %v767
    %v770 = vadd.f32 %v756, %v768
    %v771 = vadd.f32 %v757, %v768
    %v772 = vadd.f32 %v758, %v768
    %v773 = vadd.f32 %v759, %v768
    %v774 = vadd.f32 %v760, %v768
    %v775 = vadd.f32 %v761, %v768
    %v776 = vadd.f32 %v762, %v768
    %v777 = vadd.f32 %v763, %v768
    %778 = vst [vmem:[#allocation5] sm:$0xff] %v770
    %779 = vst [vmem:[#allocation5 + $0x8] sm:$0xff] %v771
    %780 = vst [vmem:[#allocation5 + $0x10] sm:$0xff] %v772
    %781 = vst [vmem:[#allocation5 + $0x18] sm:$0xff] %v773
    %782 = vst [vmem:[#allocation5 + $0x20] sm:$0xff] %v774
    %783 = vst [vmem:[#allocation5 + $0x28] sm:$0xff] %v775
    %784 = vst [vmem:[#allocation5 + $0x30] sm:$0xff] %v776
    %785 = vst [vmem:[#allocation5 + $0x38] sm:$0xff] %v777
    %v786 = vld [vmem:[%s0 + $0x40] sm:$0xff]
    %v787 = vld [vmem:[%s0 + $0x48] sm:$0xff]
    %v788 = vld [vmem:[%s0 + $0x50] sm:$0xff]
    %v789 = vld [vmem:[%s0 + $0x58] sm:$0xff]
    %v790 = vld [vmem:[%s0 + $0x60] sm:$0xff]
    %v791 = vld [vmem:[%s0 + $0x68] sm:$0xff]
    %v792 = vld [vmem:[%s0 + $0x70] sm:$0xff]
    %v793 = vld [vmem:[%s0 + $0x78] sm:$0xff]
    %v794 = vld [vmem:[%s1 + $0x40] sm:$0xff]
    %v795 = vld [vmem:[%s1 + $0x48] sm:$0xff]
    %v796 = vld [vmem:[%s1 + $0x50] sm:$0xff]
    %v797 = vld [vmem:[%s1 + $0x58] sm:$0xff]
    %v798 = vld [vmem:[%s1 + $0x60] sm:$0xff]
    %v799 = vld [vmem:[%s1 + $0x68] sm:$0xff]
    %v800 = vld [vmem:[%s1 + $0x70] sm:$0xff]
    %v801 = vld [vmem:[%s1 + $0x78] sm:$0xff]
    %802 = vset.pattern.permute.xlu0 0
    %803 = vperm.xlu0 %802, %v786
    %v804 = vpop.permute.xlu0 %803
    %805 = vset.pattern.permute.xlu0 0
    %806 = vperm.xlu0 %805, %v787
    %v807 = vpop.permute.xlu0 %806
    %808 = vset.pattern.permute.xlu0 0
    %809 = vperm.xlu0 %808, %v788
    %v810 = vpop.permute.xlu0 %809
    %811 = vset.pattern.permute.xlu0 0
    %812 = vperm.xlu0 %811, %v789
    %v813 = vpop.permute.xlu0 %812
    %814 = vset.pattern.permute.xlu0 0
    %815 = vperm.xlu0 %814, %v790
    %v816 = vpop.permute.xlu0 %815
    %817 = vset.pattern.permute.xlu0 0
    %818 = vperm.xlu0 %817, %v791
    %v819 = vpop.permute.xlu0 %818
    %820 = vset.pattern.permute.xlu0 0
    %821 = vperm.xlu0 %820, %v792
    %v822 = vpop.permute.xlu0 %821
    %823 = vset.pattern.permute.xlu0 0
    %824 = vperm.xlu0 %823, %v793
    %v825 = vpop.permute.xlu0 %824
    %vm826 = vcmp.eq.s32.totalorder %v804, %v39
    %vm827 = vcmp.eq.s32.totalorder %v804, %v40
    %vm828 = vcmp.eq.s32.totalorder %v804, %v41
    %vm829 = vcmp.eq.s32.totalorder %v804, %v42
    %vm830 = vcmp.eq.s32.totalorder %v807, %v39
    %vm831 = vcmp.eq.s32.totalorder %v807, %v40
    %vm832 = vcmp.eq.s32.totalorder %v807, %v41
    %vm833 = vcmp.eq.s32.totalorder %v807, %v42
    %vm834 = vcmp.eq.s32.totalorder %v810, %v39
    %vm835 = vcmp.eq.s32.totalorder %v810, %v40
    %vm836 = vcmp.eq.s32.totalorder %v810, %v41
    %vm837 = vcmp.eq.s32.totalorder %v810, %v42
    %vm838 = vcmp.eq.s32.totalorder %v813, %v39
    %vm839 = vcmp.eq.s32.totalorder %v813, %v40
    %vm840 = vcmp.eq.s32.totalorder %v813, %v41
    %vm841 = vcmp.eq.s32.totalorder %v813, %v42
    %vm842 = vcmp.eq.s32.totalorder %v816, %v39
    %vm843 = vcmp.eq.s32.totalorder %v816, %v40
    %vm844 = vcmp.eq.s32.totalorder %v816, %v41
    %vm845 = vcmp.eq.s32.totalorder %v816, %v42
    %vm846 = vcmp.eq.s32.totalorder %v819, %v39
    %vm847 = vcmp.eq.s32.totalorder %v819, %v40
    %vm848 = vcmp.eq.s32.totalorder %v819, %v41
    %vm849 = vcmp.eq.s32.totalorder %v819, %v42
    %vm850 = vcmp.eq.s32.totalorder %v822, %v39
    %vm851 = vcmp.eq.s32.totalorder %v822, %v40
    %vm852 = vcmp.eq.s32.totalorder %v822, %v41
    %vm853 = vcmp.eq.s32.totalorder %v822, %v42
    %vm854 = vcmp.eq.s32.totalorder %v825, %v39
    %vm855 = vcmp.eq.s32.totalorder %v825, %v40
    %vm856 = vcmp.eq.s32.totalorder %v825, %v41
    %vm857 = vcmp.eq.s32.totalorder %v825, %v42
    %v858 = vsel %vm826, 1, 0
    %v859 = vsel %vm827, 1, 0
    %v860 = vsel %vm828, 1, 0
    %v861 = vsel %vm829, 1, 0
    %v862 = vsel %vm830, 1, 0
    %v863 = vsel %vm831, 1, 0
    %v864 = vsel %vm832, 1, 0
    %v865 = vsel %vm833, 1, 0
    %v866 = vsel %vm834, 1, 0
    %v867 = vsel %vm835, 1, 0
    %v868 = vsel %vm836, 1, 0
    %v869 = vsel %vm837, 1, 0
    %v870 = vsel %vm838, 1, 0
    %v871 = vsel %vm839, 1, 0
    %v872 = vsel %vm840, 1, 0
    %v873 = vsel %vm841, 1, 0
    %v874 = vsel %vm842, 1, 0
    %v875 = vsel %vm843, 1, 0
    %v876 = vsel %vm844, 1, 0
    %v877 = vsel %vm845, 1, 0
    %v878 = vsel %vm846, 1, 0
    %v879 = vsel %vm847, 1, 0
    %v880 = vsel %vm848, 1, 0
    %v881 = vsel %vm849, 1, 0
    %v882 = vsel %vm850, 1, 0
    %v883 = vsel %vm851, 1, 0
    %v884 = vsel %vm852, 1, 0
    %v885 = vsel %vm853, 1, 0
    %v886 = vsel %vm854, 1, 0
    %v887 = vsel %vm855, 1, 0
    %v888 = vsel %vm856, 1, 0
    %v889 = vsel %vm857, 1, 0
    %v890 = vcvt.s32.f32 %v858
    %v891 = vcvt.s32.f32 %v859
    %v892 = vcvt.s32.f32 %v860
    %v893 = vcvt.s32.f32 %v861
    %v894 = vcvt.s32.f32 %v862
    %v895 = vcvt.s32.f32 %v863
    %v896 = vcvt.s32.f32 %v864
    %v897 = vcvt.s32.f32 %v865
    %v898 = vcvt.s32.f32 %v866
    %v899 = vcvt.s32.f32 %v867
    %v900 = vcvt.s32.f32 %v868
    %v901 = vcvt.s32.f32 %v869
    %v902 = vcvt.s32.f32 %v870
    %v903 = vcvt.s32.f32 %v871
    %v904 = vcvt.s32.f32 %v872
    %v905 = vcvt.s32.f32 %v873
    %v906 = vcvt.s32.f32 %v874
    %v907 = vcvt.s32.f32 %v875
    %v908 = vcvt.s32.f32 %v876
    %v909 = vcvt.s32.f32 %v877
    %v910 = vcvt.s32.f32 %v878
    %v911 = vcvt.s32.f32 %v879
    %v912 = vcvt.s32.f32 %v880
    %v913 = vcvt.s32.f32 %v881
    %v914 = vcvt.s32.f32 %v882
    %v915 = vcvt.s32.f32 %v883
    %v916 = vcvt.s32.f32 %v884
    %v917 = vcvt.s32.f32 %v885
    %v918 = vcvt.s32.f32 %v886
    %v919 = vcvt.s32.f32 %v887
    %v920 = vcvt.s32.f32 %v888
    %v921 = vcvt.s32.f32 %v889
    %922 = vset.pattern.permute.xlu0 0
    %923 = vperm.xlu0 %922, %v794
    %v924 = vpop.permute.xlu0 %923
    %925 = vset.pattern.permute.xlu0 0
    %926 = vperm.xlu0 %925, %v795
    %v927 = vpop.permute.xlu0 %926
    %928 = vset.pattern.permute.xlu0 0
    %929 = vperm.xlu0 %928, %v796
    %v930 = vpop.permute.xlu0 %929
    %931 = vset.pattern.permute.xlu0 0
    %932 = vperm.xlu0 %931, %v797
    %v933 = vpop.permute.xlu0 %932
    %934 = vset.pattern.permute.xlu0 0
    %935 = vperm.xlu0 %934, %v798
    %v936 = vpop.permute.xlu0 %935
    %937 = vset.pattern.permute.xlu0 0
    %938 = vperm.xlu0 %937, %v799
    %v939 = vpop.permute.xlu0 %938
    %940 = vset.pattern.permute.xlu0 0
    %941 = vperm.xlu0 %940, %v800
    %v942 = vpop.permute.xlu0 %941
    %943 = vset.pattern.permute.xlu0 0
    %944 = vperm.xlu0 %943, %v801
    %v945 = vpop.permute.xlu0 %944
    %vm946 = vcmp.eq.s32.totalorder %v924, %v39
    %vm947 = vcmp.eq.s32.totalorder %v927, %v39
    %vm948 = vcmp.eq.s32.totalorder %v930, %v39
    %vm949 = vcmp.eq.s32.totalorder %v933, %v39
    %vm950 = vcmp.eq.s32.totalorder %v936, %v39
    %vm951 = vcmp.eq.s32.totalorder %v939, %v39
    %vm952 = vcmp.eq.s32.totalorder %v942, %v39
    %vm953 = vcmp.eq.s32.totalorder %v945, %v39
    %v954 = vsel %vm946, 1, 0
    %v955 = vsel %vm947, 1, 0
    %v956 = vsel %vm948, 1, 0
    %v957 = vsel %vm949, 1, 0
    %v958 = vsel %vm950, 1, 0
    %v959 = vsel %vm951, 1, 0
    %v960 = vsel %vm952, 1, 0
    %v961 = vsel %vm953, 1, 0
    %v962 = vcvt.s32.f32 %v954
    %v963 = vcvt.s32.f32 %v955
    %v964 = vcvt.s32.f32 %v956
    %v965 = vcvt.s32.f32 %v957
    %v966 = vcvt.s32.f32 %v958
    %v967 = vcvt.s32.f32 %v959
    %v968 = vcvt.s32.f32 %v960
    %v969 = vcvt.s32.f32 %v961
    %v971 = vsel %vm297, %v962, 0
    %v974 = vsel %vm297, %v963, 0
    %v977 = vsel %vm297, %v964, 0
    %v980 = vsel %vm297, %v965, 0
    %v983 = vsel %vm297, %v966, 0
    %v986 = vsel %vm297, %v967, 0
    %v989 = vsel %vm297, %v968, 0
    %v992 = vsel %vm297, %v969, 0
    %994 = vmatprep.subr.mxu0 0.0
    %995 = vmatpush1.msra.mxu0 0.0
    %996 = vmatprep.subr.mxu0 0.0
    %997 = vmatpush1.msra.mxu0 0.0
    %998 = vmatprep.subr.mxu0 0.0
    %999 = vmatpush1.msra.mxu0 0.0
    %1000 = vmatprep.subr.mxu0 0.0
    %1001 = vmatpush1.msra.mxu0 0.0
    %1002 = vmatprep.subr.mxu0 0.0
    %1003 = vmatpush1.msra.mxu0 0.0
    %1004 = vmatprep.subr.mxu0 0.0
    %1005 = vmatpush1.msra.mxu0 0.0
    %1006 = vmatprep.subr.mxu0 0.0
    %1007 = vmatpush1.msra.mxu0 0.0
    %1008 = vmatprep.subr.mxu0 0.0
    %1009 = vmatpush1.msra.mxu0 0.0
    %1010 = vmatprep.subr.mxu0 0.0
    %1011 = vmatpush1.msra.mxu0 0.0
    %1012 = vmatprep.subr.mxu0 0.0
    %1013 = vmatpush1.msra.mxu0 0.0
    %1014 = vmatprep.subr.mxu0 0.0
    %1015 = vmatpush1.msra.mxu0 0.0
    %1016 = vmatprep.subr.mxu0 0.0
    %1017 = vmatpush1.msra.mxu0 0.0
    %1018 = vmatprep.subr.mxu0 0.0
    %1019 = vmatpush1.msra.mxu0 %v112
    %1020 = vmatprep.subr.mxu0 0.0
    %1021 = vmatpush1.msra.mxu0 %v111
    %1022 = vmatprep.subr.mxu0 0.0
    %1023 = vmatpush1.msra.mxu0 %v110
    %1024 = vmatprep.subr.mxu0 0.0
    %1025 = vmatpush1.msra.mxu0 %v109
    %1026 = vmatprep.subr.mxu0 0.0
    %1027 = vmatpush2.msra.mxu0 0.0
    %1028 = vmatprep.subr.mxu0 0.0
    %1029 = vmatpush2.msra.mxu0 0.0
    %1030 = vmatprep.subr.mxu0 0.0
    %1031 = vmatpush2.msra.mxu0 0.0
    %1032 = vmatprep.subr.mxu0 0.0
    %1033 = vmatpush2.msra.mxu0 0.0
    %1034 = vmatprep.subr.mxu0 0.0
    %1035 = vmatpush2.msra.mxu0 0.0
    %1036 = vmatprep.subr.mxu0 0.0
    %1037 = vmatpush2.msra.mxu0 0.0
    %1038 = vmatprep.subr.mxu0 0.0
    %1039 = vmatpush2.msra.mxu0 0.0
    %1040 = vmatprep.subr.mxu0 0.0
    %1041 = vmatpush2.msra.mxu0 0.0
    %1042 = vmatprep.subr.mxu0 0.0
    %1043 = vmatpush2.msra.mxu0 0.0
    %1044 = vmatprep.subr.mxu0 0.0
    %1045 = vmatpush2.msra.mxu0 0.0
    %1046 = vmatprep.subr.mxu0 0.0
    %1047 = vmatpush2.msra.mxu0 0.0
    %1048 = vmatprep.subr.mxu0 0.0
    %1049 = vmatpush2.msra.mxu0 0.0
    %1050 = vmatprep.subr.mxu0 0.0
    %1051 = vmatpush2.msra.mxu0 0.0
    %1052 = vmatprep.subr.mxu0 0.0
    %1053 = vmatpush2.msra.mxu0 0.0
    %1054 = vmatprep.subr.mxu0 0.0
    %1055 = vmatpush2.msra.mxu0 0.0
    %1056 = vmatprep.subr.mxu0 0.0
    %1057 = vmatpush2.msra.mxu0 0.0
    %1058 = vmatprep.mubr.f32.mxu0 0.0
    %1059 = vmatmul.mubr.f32.gmra.mxu0 %v971
    %v1060 = vpop.f32.mrf.mxu0
    %v1061 = vadd.f32 0.0, %v1060
    %v1062 = vpop.f32.mrf.mxu0
    %1063 = vmatprep.mubr.f32.mxu0 0.0
    %1064 = vmatmul.mubr.f32.gmra.mxu0 %v974
    %v1065 = vpop.f32.mrf.mxu0
    %v1066 = vadd.f32 0.0, %v1065
    %v1067 = vpop.f32.mrf.mxu0
    %1068 = vmatprep.mubr.f32.mxu0 0.0
    %1069 = vmatmul.mubr.f32.gmra.mxu0 %v977
    %v1070 = vpop.f32.mrf.mxu0
    %v1071 = vadd.f32 0.0, %v1070
    %v1072 = vpop.f32.mrf.mxu0
    %1073 = vmatprep.mubr.f32.mxu0 0.0
    %1074 = vmatmul.mubr.f32.gmra.mxu0 %v980
    %v1075 = vpop.f32.mrf.mxu0
    %v1076 = vadd.f32 0.0, %v1075
    %v1077 = vpop.f32.mrf.mxu0
    %1078 = vmatprep.mubr.f32.mxu0 0.0
    %1079 = vmatmul.mubr.f32.gmra.mxu0 %v983
    %v1080 = vpop.f32.mrf.mxu0
    %v1081 = vadd.f32 0.0, %v1080
    %v1082 = vpop.f32.mrf.mxu0
    %1083 = vmatprep.mubr.f32.mxu0 0.0
    %1084 = vmatmul.mubr.f32.gmra.mxu0 %v986
    %v1085 = vpop.f32.mrf.mxu0
    %v1086 = vadd.f32 0.0, %v1085
    %v1087 = vpop.f32.mrf.mxu0
    %1088 = vmatprep.mubr.f32.mxu0 0.0
    %1089 = vmatmul.mubr.f32.gmra.mxu0 %v989
    %v1090 = vpop.f32.mrf.mxu0
    %v1091 = vadd.f32 0.0, %v1090
    %v1092 = vpop.f32.mrf.mxu0
    %1093 = vmatprep.mubr.f32.mxu0 0.0
    %1094 = vmatmul.mubr.f32.gmra.mxu0 %v992
    %v1095 = vpop.f32.mrf.mxu0
    %v1096 = vadd.f32 0.0, %v1095
    %v1097 = vpop.f32.mrf.mxu0
    %1098 = vdwg.mxu0
    %1099 = vmatprep.subr.mxu0 0.0
    %1100 = vmatpush1.msra.mxu0 %v60
    %1101 = vmatprep.subr.mxu0 0.0
    %1102 = vmatpush1.msra.mxu0 %v59
    %1103 = vmatprep.subr.mxu0 0.0
    %1104 = vmatpush1.msra.mxu0 %v58
    %1105 = vmatprep.subr.mxu0 0.0
    %1106 = vmatpush1.msra.mxu0 %v57
    %1107 = vmatprep.subr.mxu0 0.0
    %1108 = vmatpush1.msra.mxu0 %v56
    %1109 = vmatprep.subr.mxu0 0.0
    %1110 = vmatpush1.msra.mxu0 %v55
    %1111 = vmatprep.subr.mxu0 0.0
    %1112 = vmatpush1.msra.mxu0 %v54
    %1113 = vmatprep.subr.mxu0 0.0
    %1114 = vmatpush1.msra.mxu0 %v53
    %1115 = vmatprep.subr.mxu0 0.0
    %1116 = vmatpush1.msra.mxu0 %v52
    %1117 = vmatprep.subr.mxu0 0.0
    %1118 = vmatpush1.msra.mxu0 %v51
    %1119 = vmatprep.subr.mxu0 0.0
    %1120 = vmatpush1.msra.mxu0 %v50
    %1121 = vmatprep.subr.mxu0 0.0
    %1122 = vmatpush1.msra.mxu0 %v49
    %1123 = vmatprep.subr.mxu0 0.0
    %1124 = vmatpush1.msra.mxu0 %v48
    %1125 = vmatprep.subr.mxu0 0.0
    %1126 = vmatpush1.msra.mxu0 %v47
    %1127 = vmatprep.subr.mxu0 0.0
    %1128 = vmatpush1.msra.mxu0 %v46
    %1129 = vmatprep.subr.mxu0 0.0
    %1130 = vmatpush1.msra.mxu0 %v45
    %1131 = vmatprep.subr.mxu0 0.0
    %1132 = vmatpush2.msra.mxu0 %v76
    %1133 = vmatprep.subr.mxu0 0.0
    %1134 = vmatpush2.msra.mxu0 %v75
    %1135 = vmatprep.subr.mxu0 0.0
    %1136 = vmatpush2.msra.mxu0 %v74
    %1137 = vmatprep.subr.mxu0 0.0
    %1138 = vmatpush2.msra.mxu0 %v73
    %1139 = vmatprep.subr.mxu0 0.0
    %1140 = vmatpush2.msra.mxu0 %v72
    %1141 = vmatprep.subr.mxu0 0.0
    %1142 = vmatpush2.msra.mxu0 %v71
    %1143 = vmatprep.subr.mxu0 0.0
    %1144 = vmatpush2.msra.mxu0 %v70
    %1145 = vmatprep.subr.mxu0 0.0
    %1146 = vmatpush2.msra.mxu0 %v69
    %1147 = vmatprep.subr.mxu0 0.0
    %1148 = vmatpush2.msra.mxu0 %v68
    %1149 = vmatprep.subr.mxu0 0.0
    %1150 = vmatpush2.msra.mxu0 %v67
    %1151 = vmatprep.subr.mxu0 0.0
    %1152 = vmatpush2.msra.mxu0 %v66
    %1153 = vmatprep.subr.mxu0 0.0
    %1154 = vmatpush2.msra.mxu0 %v65
    %1155 = vmatprep.subr.mxu0 0.0
    %1156 = vmatpush2.msra.mxu0 %v64
    %1157 = vmatprep.subr.mxu0 0.0
    %1158 = vmatpush2.msra.mxu0 %v63
    %1159 = vmatprep.subr.mxu0 0.0
    %1160 = vmatpush2.msra.mxu0 %v62
    %1161 = vmatprep.subr.mxu0 0.0
    %1162 = vmatpush2.msra.mxu0 %v61
    %1163 = vmatprep.mubr.f32.mxu0 %v891
    %1164 = vmatmul.mubr.f32.gmra.mxu0 %v890
    %v1165 = vpop.f32.mrf.mxu0
    %v1166 = vadd.f32 %v1061, %v1165
    %v1167 = vpop.f32.mrf.mxu0
    %1168 = vmatprep.mubr.f32.mxu0 %v895
    %1169 = vmatmul.mubr.f32.gmra.mxu0 %v894
    %v1170 = vpop.f32.mrf.mxu0
    %v1171 = vadd.f32 %v1066, %v1170
    %v1172 = vpop.f32.mrf.mxu0
    %1173 = vmatprep.mubr.f32.mxu0 %v899
    %1174 = vmatmul.mubr.f32.gmra.mxu0 %v898
    %v1175 = vpop.f32.mrf.mxu0
    %v1176 = vadd.f32 %v1071, %v1175
    %v1177 = vpop.f32.mrf.mxu0
    %1178 = vmatprep.mubr.f32.mxu0 %v903
    %1179 = vmatmul.mubr.f32.gmra.mxu0 %v902
    %v1180 = vpop.f32.mrf.mxu0
    %v1181 = vadd.f32 %v1076, %v1180
    %v1182 = vpop.f32.mrf.mxu0
    %1183 = vmatprep.mubr.f32.mxu0 %v907
    %1184 = vmatmul.mubr.f32.gmra.mxu0 %v906
    %v1185 = vpop.f32.mrf.mxu0
    %v1186 = vadd.f32 %v1081, %v1185
    %v1187 = vpop.f32.mrf.mxu0
    %1188 = vmatprep.mubr.f32.mxu0 %v911
    %1189 = vmatmul.mubr.f32.gmra.mxu0 %v910
    %v1190 = vpop.f32.mrf.mxu0
    %v1191 = vadd.f32 %v1086, %v1190
    %v1192 = vpop.f32.mrf.mxu0
    %1193 = vmatprep.mubr.f32.mxu0 %v915
    %1194 = vmatmul.mubr.f32.gmra.mxu0 %v914
    %v1195 = vpop.f32.mrf.mxu0
    %v1196 = vadd.f32 %v1091, %v1195
    %v1197 = vpop.f32.mrf.mxu0
    %1198 = vmatprep.mubr.f32.mxu0 %v919
    %1199 = vmatmul.mubr.f32.gmra.mxu0 %v918
    %v1200 = vpop.f32.mrf.mxu0
    %v1201 = vadd.f32 %v1096, %v1200
    %v1202 = vpop.f32.mrf.mxu0
    %1203 = vdwg.mxu0
    %1204 = vmatprep.subr.mxu0 0.0
    %1205 = vmatpush1.msra.mxu0 %v92
    %1206 = vmatprep.subr.mxu0 0.0
    %1207 = vmatpush1.msra.mxu0 %v91
    %1208 = vmatprep.subr.mxu0 0.0
    %1209 = vmatpush1.msra.mxu0 %v90
    %1210 = vmatprep.subr.mxu0 0.0
    %1211 = vmatpush1.msra.mxu0 %v89
    %1212 = vmatprep.subr.mxu0 0.0
    %1213 = vmatpush1.msra.mxu0 %v88
    %1214 = vmatprep.subr.mxu0 0.0
    %1215 = vmatpush1.msra.mxu0 %v87
    %1216 = vmatprep.subr.mxu0 0.0
    %1217 = vmatpush1.msra.mxu0 %v86
    %1218 = vmatprep.subr.mxu0 0.0
    %1219 = vmatpush1.msra.mxu0 %v85
    %1220 = vmatprep.subr.mxu0 0.0
    %1221 = vmatpush1.msra.mxu0 %v84
    %1222 = vmatprep.subr.mxu0 0.0
    %1223 = vmatpush1.msra.mxu0 %v83
    %1224 = vmatprep.subr.mxu0 0.0
    %1225 = vmatpush1.msra.mxu0 %v82
    %1226 = vmatprep.subr.mxu0 0.0
    %1227 = vmatpush1.msra.mxu0 %v81
    %1228 = vmatprep.subr.mxu0 0.0
    %1229 = vmatpush1.msra.mxu0 %v80
    %1230 = vmatprep.subr.mxu0 0.0
    %1231 = vmatpush1.msra.mxu0 %v79
    %1232 = vmatprep.subr.mxu0 0.0
    %1233 = vmatpush1.msra.mxu0 %v78
    %1234 = vmatprep.subr.mxu0 0.0
    %1235 = vmatpush1.msra.mxu0 %v77
    %1236 = vmatprep.subr.mxu0 0.0
    %1237 = vmatpush2.msra.mxu0 %v108
    %1238 = vmatprep.subr.mxu0 0.0
    %1239 = vmatpush2.msra.mxu0 %v107
    %1240 = vmatprep.subr.mxu0 0.0
    %1241 = vmatpush2.msra.mxu0 %v106
    %1242 = vmatprep.subr.mxu0 0.0
    %1243 = vmatpush2.msra.mxu0 %v105
    %1244 = vmatprep.subr.mxu0 0.0
    %1245 = vmatpush2.msra.mxu0 %v104
    %1246 = vmatprep.subr.mxu0 0.0
    %1247 = vmatpush2.msra.mxu0 %v103
    %1248 = vmatprep.subr.mxu0 0.0
    %1249 = vmatpush2.msra.mxu0 %v102
    %1250 = vmatprep.subr.mxu0 0.0
    %1251 = vmatpush2.msra.mxu0 %v101
    %1252 = vmatprep.subr.mxu0 0.0
    %1253 = vmatpush2.msra.mxu0 %v100
    %1254 = vmatprep.subr.mxu0 0.0
    %1255 = vmatpush2.msra.mxu0 %v99
    %1256 = vmatprep.subr.mxu0 0.0
    %1257 = vmatpush2.msra.mxu0 %v98
    %1258 = vmatprep.subr.mxu0 0.0
    %1259 = vmatpush2.msra.mxu0 %v97
    %1260 = vmatprep.subr.mxu0 0.0
    %1261 = vmatpush2.msra.mxu0 %v96
    %1262 = vmatprep.subr.mxu0 0.0
    %1263 = vmatpush2.msra.mxu0 %v95
    %1264 = vmatprep.subr.mxu0 0.0
    %1265 = vmatpush2.msra.mxu0 %v94
    %1266 = vmatprep.subr.mxu0 0.0
    %1267 = vmatpush2.msra.mxu0 %v93
    %1268 = vmatprep.mubr.f32.mxu0 %v893
    %1269 = vmatmul.mubr.f32.gmra.mxu0 %v892
    %v1270 = vpop.f32.mrf.mxu0
    %v1271 = vadd.f32 %v1166, %v1270
    %v1272 = vpop.f32.mrf.mxu0
    %1273 = vmatprep.mubr.f32.mxu0 %v897
    %1274 = vmatmul.mubr.f32.gmra.mxu0 %v896
    %v1275 = vpop.f32.mrf.mxu0
    %v1276 = vadd.f32 %v1171, %v1275
    %v1277 = vpop.f32.mrf.mxu0
    %1278 = vmatprep.mubr.f32.mxu0 %v901
    %1279 = vmatmul.mubr.f32.gmra.mxu0 %v900
    %v1280 = vpop.f32.mrf.mxu0
    %v1281 = vadd.f32 %v1176, %v1280
    %v1282 = vpop.f32.mrf.mxu0
    %1283 = vmatprep.mubr.f32.mxu0 %v905
    %1284 = vmatmul.mubr.f32.gmra.mxu0 %v904
    %v1285 = vpop.f32.mrf.mxu0
    %v1286 = vadd.f32 %v1181, %v1285
    %v1287 = vpop.f32.mrf.mxu0
    %1288 = vmatprep.mubr.f32.mxu0 %v909
    %1289 = vmatmul.mubr.f32.gmra.mxu0 %v908
    %v1290 = vpop.f32.mrf.mxu0
    %v1291 = vadd.f32 %v1186, %v1290
    %v1292 = vpop.f32.mrf.mxu0
    %1293 = vmatprep.mubr.f32.mxu0 %v913
    %1294 = vmatmul.mubr.f32.gmra.mxu0 %v912
    %v1295 = vpop.f32.mrf.mxu0
    %v1296 = vadd.f32 %v1191, %v1295
    %v1297 = vpop.f32.mrf.mxu0
    %1298 = vmatprep.mubr.f32.mxu0 %v917
    %1299 = vmatmul.mubr.f32.gmra.mxu0 %v916
    %v1300 = vpop.f32.mrf.mxu0
    %v1301 = vadd.f32 %v1196, %v1300
    %v1302 = vpop.f32.mrf.mxu0
    %1303 = vmatprep.mubr.f32.mxu0 %v921
    %1304 = vmatmul.mubr.f32.gmra.mxu0 %v920
    %v1305 = vpop.f32.mrf.mxu0
    %v1306 = vadd.f32 %v1201, %v1305
    %v1307 = vpop.f32.mrf.mxu0
    %1308 = vdwg.mxu0
    %1309 = vadd.xlane.f32.xlu0 %v1271
    %v1310 = vpop.xlane.xlu0 %1309
    %1311 = vadd.xlane.f32.xlu0 %v1276
    %v1312 = vpop.xlane.xlu0 %1311
    %1313 = vadd.xlane.f32.xlu0 %v1281
    %v1314 = vpop.xlane.xlu0 %1313
    %1315 = vadd.xlane.f32.xlu0 %v1286
    %v1316 = vpop.xlane.xlu0 %1315
    %1317 = vadd.xlane.f32.xlu0 %v1291
    %v1318 = vpop.xlane.xlu0 %1317
    %1319 = vadd.xlane.f32.xlu0 %v1296
    %v1320 = vpop.xlane.xlu0 %1319
    %1321 = vadd.xlane.f32.xlu0 %v1301
    %v1322 = vpop.xlane.xlu0 %1321
    %1323 = vadd.xlane.f32.xlu0 %v1306
    %v1324 = vpop.xlane.xlu0 %1323
    %v1325 = vmul.f32 %v1310, %v653
    %v1326 = vmul.f32 %v1312, %v653
    %v1327 = vmul.f32 %v1314, %v653
    %v1328 = vmul.f32 %v1316, %v653
    %v1329 = vmul.f32 %v1318, %v653
    %v1330 = vmul.f32 %v1320, %v653
    %v1331 = vmul.f32 %v1322, %v653
    %v1332 = vmul.f32 %v1324, %v653
    %v1333 = vmul.f32 %v1271, %v1271
    %v1334 = vmul.f32 %v1276, %v1276
    %v1335 = vmul.f32 %v1281, %v1281
    %v1336 = vmul.f32 %v1286, %v1286
    %v1337 = vmul.f32 %v1291, %v1291
    %v1338 = vmul.f32 %v1296, %v1296
    %v1339 = vmul.f32 %v1301, %v1301
    %v1340 = vmul.f32 %v1306, %v1306
    %1341 = vadd.xlane.f32.xlu0 %v1333
    %v1342 = vpop.xlane.xlu0 %1341
    %1343 = vadd.xlane.f32.xlu0 %v1334
    %v1344 = vpop.xlane.xlu0 %1343
    %1345 = vadd.xlane.f32.xlu0 %v1335
    %v1346 = vpop.xlane.xlu0 %1345
    %1347 = vadd.xlane.f32.xlu0 %v1336
    %v1348 = vpop.xlane.xlu0 %1347
    %1349 = vadd.xlane.f32.xlu0 %v1337
    %v1350 = vpop.xlane.xlu0 %1349
    %1351 = vadd.xlane.f32.xlu0 %v1338
    %v1352 = vpop.xlane.xlu0 %1351
    %1353 = vadd.xlane.f32.xlu0 %v1339
    %v1354 = vpop.xlane.xlu0 %1353
    %1355 = vadd.xlane.f32.xlu0 %v1340
    %v1356 = vpop.xlane.xlu0 %1355
    %v1357 = vmul.f32 %v1342, %v653
    %v1358 = vmul.f32 %v1344, %v653
    %v1359 = vmul.f32 %v1346, %v653
    %v1360 = vmul.f32 %v1348, %v653
    %v1361 = vmul.f32 %v1350, %v653
    %v1362 = vmul.f32 %v1352, %v653
    %v1363 = vmul.f32 %v1354, %v653
    %v1364 = vmul.f32 %v1356, %v653
    %v1365 = vmul.f32 %v1325, %v1325
    %v1366 = vmul.f32 %v1326, %v1326
    %v1367 = vmul.f32 %v1327, %v1327
    %v1368 = vmul.f32 %v1328, %v1328
    %v1369 = vmul.f32 %v1329, %v1329
    %v1370 = vmul.f32 %v1330, %v1330
    %v1371 = vmul.f32 %v1331, %v1331
    %v1372 = vmul.f32 %v1332, %v1332
    %v1373 = vsub.f32 %v1357, %v1365
    %v1374 = vsub.f32 %v1358, %v1366
    %v1375 = vsub.f32 %v1359, %v1367
    %v1376 = vsub.f32 %v1360, %v1368
    %v1377 = vsub.f32 %v1361, %v1369
    %v1378 = vsub.f32 %v1362, %v1370
    %v1379 = vsub.f32 %v1363, %v1371
    %v1380 = vsub.f32 %v1364, %v1372
    %v1381 = vmax.f32 %v1373, 0.0
    %v1382 = vmax.f32 %v1374, 0.0
    %v1383 = vmax.f32 %v1375, 0.0
    %v1384 = vmax.f32 %v1376, 0.0
    %v1385 = vmax.f32 %v1377, 0.0
    %v1386 = vmax.f32 %v1378, 0.0
    %v1387 = vmax.f32 %v1379, 0.0
    %v1388 = vmax.f32 %v1380, 0.0
    %v1389 = vadd.f32 %v1381, 1e-12
    %v1390 = vadd.f32 %v1382, 1e-12
    %v1391 = vadd.f32 %v1383, 1e-12
    %v1392 = vadd.f32 %v1384, 1e-12
    %v1393 = vadd.f32 %v1385, 1e-12
    %v1394 = vadd.f32 %v1386, 1e-12
    %v1395 = vadd.f32 %v1387, 1e-12
    %v1396 = vadd.f32 %v1388, 1e-12
    %v1397 = vrsqrt.pop %v1389
    %v1398 = vrsqrt.pop %v1390
    %v1399 = vrsqrt.pop %v1391
    %v1400 = vrsqrt.pop %v1392
    %v1401 = vrsqrt.pop %v1393
    %v1402 = vrsqrt.pop %v1394
    %v1403 = vrsqrt.pop %v1395
    %v1404 = vrsqrt.pop %v1396
    %v1405 = vsub.f32 %v1271, %v1325
    %v1406 = vsub.f32 %v1276, %v1326
    %v1407 = vsub.f32 %v1281, %v1327
    %v1408 = vsub.f32 %v1286, %v1328
    %v1409 = vsub.f32 %v1291, %v1329
    %v1410 = vsub.f32 %v1296, %v1330
    %v1411 = vsub.f32 %v1301, %v1331
    %v1412 = vsub.f32 %v1306, %v1332
    %v1413 = vmul.f32 %v1405, %v1397
    %v1414 = vmul.f32 %v1406, %v1398
    %v1415 = vmul.f32 %v1407, %v1399
    %v1416 = vmul.f32 %v1408, %v1400
    %v1417 = vmul.f32 %v1409, %v1401
    %v1418 = vmul.f32 %v1410, %v1402
    %v1419 = vmul.f32 %v1411, %v1403
    %v1420 = vmul.f32 %v1412, %v1404
    %v1421 = vmul.f32 %v1413, %v754
    %v1422 = vmul.f32 %v1414, %v754
    %v1423 = vmul.f32 %v1415, %v754
    %v1424 = vmul.f32 %v1416, %v754
    %v1425 = vmul.f32 %v1417, %v754
    %v1426 = vmul.f32 %v1418, %v754
    %v1427 = vmul.f32 %v1419, %v754
    %v1428 = vmul.f32 %v1420, %v754
    %v1429 = vadd.f32 %v1421, %v768
    %v1430 = vadd.f32 %v1422, %v768
    %v1431 = vadd.f32 %v1423, %v768
    %v1432 = vadd.f32 %v1424, %v768
    %v1433 = vadd.f32 %v1425, %v768
    %v1434 = vadd.f32 %v1426, %v768
    %v1435 = vadd.f32 %v1427, %v768
    %v1436 = vadd.f32 %v1428, %v768
    %1437 = vst [vmem:[#allocation5 + $0x40] sm:$0xff] %v1429
    %1438 = vst [vmem:[#allocation5 + $0x48] sm:$0xff] %v1430
    %1439 = vst [vmem:[#allocation5 + $0x50] sm:$0xff] %v1431
    %1440 = vst [vmem:[#allocation5 + $0x58] sm:$0xff] %v1432
    %1441 = vst [vmem:[#allocation5 + $0x60] sm:$0xff] %v1433
    %1442 = vst [vmem:[#allocation5 + $0x68] sm:$0xff] %v1434
    %1443 = vst [vmem:[#allocation5 + $0x70] sm:$0xff] %v1435
    %1444 = vst [vmem:[#allocation5 + $0x78] sm:$0xff] %v1436
    %v1445 = vld [vmem:[%s0 + $0x80] sm:$0xff]
    %v1446 = vld [vmem:[%s0 + $0x88] sm:$0xff]
    %v1447 = vld [vmem:[%s0 + $0x90] sm:$0xff]
    %v1448 = vld [vmem:[%s0 + $0x98] sm:$0xff]
    %v1449 = vld [vmem:[%s0 + $0xa0] sm:$0xff]
    %v1450 = vld [vmem:[%s0 + $0xa8] sm:$0xff]
    %v1451 = vld [vmem:[%s0 + $0xb0] sm:$0xff]
    %v1452 = vld [vmem:[%s0 + $0xb8] sm:$0xff]
    %v1453 = vld [vmem:[%s1 + $0x80] sm:$0xff]
    %v1454 = vld [vmem:[%s1 + $0x88] sm:$0xff]
    %v1455 = vld [vmem:[%s1 + $0x90] sm:$0xff]
    %v1456 = vld [vmem:[%s1 + $0x98] sm:$0xff]
    %v1457 = vld [vmem:[%s1 + $0xa0] sm:$0xff]
    %v1458 = vld [vmem:[%s1 + $0xa8] sm:$0xff]
    %v1459 = vld [vmem:[%s1 + $0xb0] sm:$0xff]
    %v1460 = vld [vmem:[%s1 + $0xb8] sm:$0xff]
    %1461 = vset.pattern.permute.xlu0 0
    %1462 = vperm.xlu0 %1461, %v1445
    %v1463 = vpop.permute.xlu0 %1462
    %1464 = vset.pattern.permute.xlu0 0
    %1465 = vperm.xlu0 %1464, %v1446
    %v1466 = vpop.permute.xlu0 %1465
    %1467 = vset.pattern.permute.xlu0 0
    %1468 = vperm.xlu0 %1467, %v1447
    %v1469 = vpop.permute.xlu0 %1468
    %1470 = vset.pattern.permute.xlu0 0
    %1471 = vperm.xlu0 %1470, %v1448
    %v1472 = vpop.permute.xlu0 %1471
    %1473 = vset.pattern.permute.xlu0 0
    %1474 = vperm.xlu0 %1473, %v1449
    %v1475 = vpop.permute.xlu0 %1474
    %1476 = vset.pattern.permute.xlu0 0
    %1477 = vperm.xlu0 %1476, %v1450
    %v1478 = vpop.permute.xlu0 %1477
    %1479 = vset.pattern.permute.xlu0 0
    %1480 = vperm.xlu0 %1479, %v1451
    %v1481 = vpop.permute.xlu0 %1480
    %1482 = vset.pattern.permute.xlu0 0
    %1483 = vperm.xlu0 %1482, %v1452
    %v1484 = vpop.permute.xlu0 %1483
    %vm1485 = vcmp.eq.s32.totalorder %v1463, %v39
    %vm1486 = vcmp.eq.s32.totalorder %v1463, %v40
    %vm1487 = vcmp.eq.s32.totalorder %v1463, %v41
    %vm1488 = vcmp.eq.s32.totalorder %v1463, %v42
    %vm1489 = vcmp.eq.s32.totalorder %v1466, %v39
    %vm1490 = vcmp.eq.s32.totalorder %v1466, %v40
    %vm1491 = vcmp.eq.s32.totalorder %v1466, %v41
    %vm1492 = vcmp.eq.s32.totalorder %v1466, %v42
    %vm1493 = vcmp.eq.s32.totalorder %v1469, %v39
    %vm1494 = vcmp.eq.s32.totalorder %v1469, %v40
    %vm1495 = vcmp.eq.s32.totalorder %v1469, %v41
    %vm1496 = vcmp.eq.s32.totalorder %v1469, %v42
    %vm1497 = vcmp.eq.s32.totalorder %v1472, %v39
    %vm1498 = vcmp.eq.s32.totalorder %v1472, %v40
    %vm1499 = vcmp.eq.s32.totalorder %v1472, %v41
    %vm1500 = vcmp.eq.s32.totalorder %v1472, %v42
    %vm1501 = vcmp.eq.s32.totalorder %v1475, %v39
    %vm1502 = vcmp.eq.s32.totalorder %v1475, %v40
    %vm1503 = vcmp.eq.s32.totalorder %v1475, %v41
    %vm1504 = vcmp.eq.s32.totalorder %v1475, %v42
    %vm1505 = vcmp.eq.s32.totalorder %v1478, %v39
    %vm1506 = vcmp.eq.s32.totalorder %v1478, %v40
    %vm1507 = vcmp.eq.s32.totalorder %v1478, %v41
    %vm1508 = vcmp.eq.s32.totalorder %v1478, %v42
    %vm1509 = vcmp.eq.s32.totalorder %v1481, %v39
    %vm1510 = vcmp.eq.s32.totalorder %v1481, %v40
    %vm1511 = vcmp.eq.s32.totalorder %v1481, %v41
    %vm1512 = vcmp.eq.s32.totalorder %v1481, %v42
    %vm1513 = vcmp.eq.s32.totalorder %v1484, %v39
    %vm1514 = vcmp.eq.s32.totalorder %v1484, %v40
    %vm1515 = vcmp.eq.s32.totalorder %v1484, %v41
    %vm1516 = vcmp.eq.s32.totalorder %v1484, %v42
    %v1517 = vsel %vm1485, 1, 0
    %v1518 = vsel %vm1486, 1, 0
    %v1519 = vsel %vm1487, 1, 0
    %v1520 = vsel %vm1488, 1, 0
    %v1521 = vsel %vm1489, 1, 0
    %v1522 = vsel %vm1490, 1, 0
    %v1523 = vsel %vm1491, 1, 0
    %v1524 = vsel %vm1492, 1, 0
    %v1525 = vsel %vm1493, 1, 0
    %v1526 = vsel %vm1494, 1, 0
    %v1527 = vsel %vm1495, 1, 0
    %v1528 = vsel %vm1496, 1, 0
    %v1529 = vsel %vm1497, 1, 0
    %v1530 = vsel %vm1498, 1, 0
    %v1531 = vsel %vm1499, 1, 0
    %v1532 = vsel %vm1500, 1, 0
    %v1533 = vsel %vm1501, 1, 0
    %v1534 = vsel %vm1502, 1, 0
    %v1535 = vsel %vm1503, 1, 0
    %v1536 = vsel %vm1504, 1, 0
    %v1537 = vsel %vm1505, 1, 0
    %v1538 = vsel %vm1506, 1, 0
    %v1539 = vsel %vm1507, 1, 0
    %v1540 = vsel %vm1508, 1, 0
    %v1541 = vsel %vm1509, 1, 0
    %v1542 = vsel %vm1510, 1, 0
    %v1543 = vsel %vm1511, 1, 0
    %v1544 = vsel %vm1512, 1, 0
    %v1545 = vsel %vm1513, 1, 0
    %v1546 = vsel %vm1514, 1, 0
    %v1547 = vsel %vm1515, 1, 0
    %v1548 = vsel %vm1516, 1, 0
    %v1549 = vcvt.s32.f32 %v1517
    %v1550 = vcvt.s32.f32 %v1518
    %v1551 = vcvt.s32.f32 %v1519
    %v1552 = vcvt.s32.f32 %v1520
    %v1553 = vcvt.s32.f32 %v1521
    %v1554 = vcvt.s32.f32 %v1522
    %v1555 = vcvt.s32.f32 %v1523
    %v1556 = vcvt.s32.f32 %v1524
    %v1557 = vcvt.s32.f32 %v1525
    %v1558 = vcvt.s32.f32 %v1526
    %v1559 = vcvt.s32.f32 %v1527
    %v1560 = vcvt.s32.f32 %v1528
    %v1561 = vcvt.s32.f32 %v1529
    %v1562 = vcvt.s32.f32 %v1530
    %v1563 = vcvt.s32.f32 %v1531
    %v1564 = vcvt.s32.f32 %v1532
    %v1565 = vcvt.s32.f32 %v1533
    %v1566 = vcvt.s32.f32 %v1534
    %v1567 = vcvt.s32.f32 %v1535
    %v1568 = vcvt.s32.f32 %v1536
    %v1569 = vcvt.s32.f32 %v1537
    %v1570 = vcvt.s32.f32 %v1538
    %v1571 = vcvt.s32.f32 %v1539
    %v1572 = vcvt.s32.f32 %v1540
    %v1573 = vcvt.s32.f32 %v1541
    %v1574 = vcvt.s32.f32 %v1542
    %v1575 = vcvt.s32.f32 %v1543
    %v1576 = vcvt.s32.f32 %v1544
    %v1577 = vcvt.s32.f32 %v1545
    %v1578 = vcvt.s32.f32 %v1546
    %v1579 = vcvt.s32.f32 %v1547
    %v1580 = vcvt.s32.f32 %v1548
    %1581 = vset.pattern.permute.xlu0 0
    %1582 = vperm.xlu0 %1581, %v1453
    %v1583 = vpop.permute.xlu0 %1582
    %1584 = vset.pattern.permute.xlu0 0
    %1585 = vperm.xlu0 %1584, %v1454
    %v1586 = vpop.permute.xlu0 %1585
    %1587 = vset.pattern.permute.xlu0 0
    %1588 = vperm.xlu0 %1587, %v1455
    %v1589 = vpop.permute.xlu0 %1588
    %1590 = vset.pattern.permute.xlu0 0
    %1591 = vperm.xlu0 %1590, %v1456
    %v1592 = vpop.permute.xlu0 %1591
    %1593 = vset.pattern.permute.xlu0 0
    %1594 = vperm.xlu0 %1593, %v1457
    %v1595 = vpop.permute.xlu0 %1594
    %1596 = vset.pattern.permute.xlu0 0
    %1597 = vperm.xlu0 %1596, %v1458
    %v1598 = vpop.permute.xlu0 %1597
    %1599 = vset.pattern.permute.xlu0 0
    %1600 = vperm.xlu0 %1599, %v1459
    %v1601 = vpop.permute.xlu0 %1600
    %1602 = vset.pattern.permute.xlu0 0
    %1603 = vperm.xlu0 %1602, %v1460
    %v1604 = vpop.permute.xlu0 %1603
    %vm1605 = vcmp.eq.s32.totalorder %v1583, %v39
    %vm1606 = vcmp.eq.s32.totalorder %v1586, %v39
    %vm1607 = vcmp.eq.s32.totalorder %v1589, %v39
    %vm1608 = vcmp.eq.s32.totalorder %v1592, %v39
    %vm1609 = vcmp.eq.s32.totalorder %v1595, %v39
    %vm1610 = vcmp.eq.s32.totalorder %v1598, %v39
    %vm1611 = vcmp.eq.s32.totalorder %v1601, %v39
    %vm1612 = vcmp.eq.s32.totalorder %v1604, %v39
    %v1613 = vsel %vm1605, 1, 0
    %v1614 = vsel %vm1606, 1, 0
    %v1615 = vsel %vm1607, 1, 0
    %v1616 = vsel %vm1608, 1, 0
    %v1617 = vsel %vm1609, 1, 0
    %v1618 = vsel %vm1610, 1, 0
    %v1619 = vsel %vm1611, 1, 0
    %v1620 = vsel %vm1612, 1, 0
    %v1621 = vcvt.s32.f32 %v1613
    %v1622 = vcvt.s32.f32 %v1614
    %v1623 = vcvt.s32.f32 %v1615
    %v1624 = vcvt.s32.f32 %v1616
    %v1625 = vcvt.s32.f32 %v1617
    %v1626 = vcvt.s32.f32 %v1618
    %v1627 = vcvt.s32.f32 %v1619
    %v1628 = vcvt.s32.f32 %v1620
    %v1630 = vsel %vm297, %v1621, 0
    %v1633 = vsel %vm297, %v1622, 0
    %v1636 = vsel %vm297, %v1623, 0
    %v1639 = vsel %vm297, %v1624, 0
    %v1642 = vsel %vm297, %v1625, 0
    %v1645 = vsel %vm297, %v1626, 0
    %v1648 = vsel %vm297, %v1627, 0
    %v1651 = vsel %vm297, %v1628, 0
    %1653 = vmatprep.subr.mxu0 0.0
    %1654 = vmatpush1.msra.mxu0 0.0
    %1655 = vmatprep.subr.mxu0 0.0
    %1656 = vmatpush1.msra.mxu0 0.0
    %1657 = vmatprep.subr.mxu0 0.0
    %1658 = vmatpush1.msra.mxu0 0.0
    %1659 = vmatprep.subr.mxu0 0.0
    %1660 = vmatpush1.msra.mxu0 0.0
    %1661 = vmatprep.subr.mxu0 0.0
    %1662 = vmatpush1.msra.mxu0 0.0
    %1663 = vmatprep.subr.mxu0 0.0
    %1664 = vmatpush1.msra.mxu0 0.0
    %1665 = vmatprep.subr.mxu0 0.0
    %1666 = vmatpush1.msra.mxu0 0.0
    %1667 = vmatprep.subr.mxu0 0.0
    %1668 = vmatpush1.msra.mxu0 0.0
    %1669 = vmatprep.subr.mxu0 0.0
    %1670 = vmatpush1.msra.mxu0 0.0
    %1671 = vmatprep.subr.mxu0 0.0
    %1672 = vmatpush1.msra.mxu0 0.0
    %1673 = vmatprep.subr.mxu0 0.0
    %1674 = vmatpush1.msra.mxu0 0.0
    %1675 = vmatprep.subr.mxu0 0.0
    %1676 = vmatpush1.msra.mxu0 0.0
    %1677 = vmatprep.subr.mxu0 0.0
    %1678 = vmatpush1.msra.mxu0 %v112
    %1679 = vmatprep.subr.mxu0 0.0
    %1680 = vmatpush1.msra.mxu0 %v111
    %1681 = vmatprep.subr.mxu0 0.0
    %1682 = vmatpush1.msra.mxu0 %v110
    %1683 = vmatprep.subr.mxu0 0.0
    %1684 = vmatpush1.msra.mxu0 %v109
    %1685 = vmatprep.subr.mxu0 0.0
    %1686 = vmatpush2.msra.mxu0 0.0
    %1687 = vmatprep.subr.mxu0 0.0
    %1688 = vmatpush2.msra.mxu0 0.0
    %1689 = vmatprep.subr.mxu0 0.0
    %1690 = vmatpush2.msra.mxu0 0.0
    %1691 = vmatprep.subr.mxu0 0.0
    %1692 = vmatpush2.msra.mxu0 0.0
    %1693 = vmatprep.subr.mxu0 0.0
    %1694 = vmatpush2.msra.mxu0 0.0
    %1695 = vmatprep.subr.mxu0 0.0
    %1696 = vmatpush2.msra.mxu0 0.0
    %1697 = vmatprep.subr.mxu0 0.0
    %1698 = vmatpush2.msra.mxu0 0.0
    %1699 = vmatprep.subr.mxu0 0.0
    %1700 = vmatpush2.msra.mxu0 0.0
    %1701 = vmatprep.subr.mxu0 0.0
    %1702 = vmatpush2.msra.mxu0 0.0
    %1703 = vmatprep.subr.mxu0 0.0
    %1704 = vmatpush2.msra.mxu0 0.0
    %1705 = vmatprep.subr.mxu0 0.0
    %1706 = vmatpush2.msra.mxu0 0.0
    %1707 = vmatprep.subr.mxu0 0.0
    %1708 = vmatpush2.msra.mxu0 0.0
    %1709 = vmatprep.subr.mxu0 0.0
    %1710 = vmatpush2.msra.mxu0 0.0
    %1711 = vmatprep.subr.mxu0 0.0
    %1712 = vmatpush2.msra.mxu0 0.0
    %1713 = vmatprep.subr.mxu0 0.0
    %1714 = vmatpush2.msra.mxu0 0.0
    %1715 = vmatprep.subr.mxu0 0.0
    %1716 = vmatpush2.msra.mxu0 0.0
    %1717 = vmatprep.mubr.f32.mxu0 0.0
    %1718 = vmatmul.mubr.f32.gmra.mxu0 %v1630
    %v1719 = vpop.f32.mrf.mxu0
    %v1720 = vadd.f32 0.0, %v1719
    %v1721 = vpop.f32.mrf.mxu0
    %1722 = vmatprep.mubr.f32.mxu0 0.0
    %1723 = vmatmul.mubr.f32.gmra.mxu0 %v1633
    %v1724 = vpop.f32.mrf.mxu0
    %v1725 = vadd.f32 0.0, %v1724
    %v1726 = vpop.f32.mrf.mxu0
    %1727 = vmatprep.mubr.f32.mxu0 0.0
    %1728 = vmatmul.mubr.f32.gmra.mxu0 %v1636
    %v1729 = vpop.f32.mrf.mxu0
    %v1730 = vadd.f32 0.0, %v1729
    %v1731 = vpop.f32.mrf.mxu0
    %1732 = vmatprep.mubr.f32.mxu0 0.0
    %1733 = vmatmul.mubr.f32.gmra.mxu0 %v1639
    %v1734 = vpop.f32.mrf.mxu0
    %v1735 = vadd.f32 0.0, %v1734
    %v1736 = vpop.f32.mrf.mxu0
    %1737 = vmatprep.mubr.f32.mxu0 0.0
    %1738 = vmatmul.mubr.f32.gmra.mxu0 %v1642
    %v1739 = vpop.f32.mrf.mxu0
    %v1740 = vadd.f32 0.0, %v1739
    %v1741 = vpop.f32.mrf.mxu0
    %1742 = vmatprep.mubr.f32.mxu0 0.0
    %1743 = vmatmul.mubr.f32.gmra.mxu0 %v1645
    %v1744 = vpop.f32.mrf.mxu0
    %v1745 = vadd.f32 0.0, %v1744
    %v1746 = vpop.f32.mrf.mxu0
    %1747 = vmatprep.mubr.f32.mxu0 0.0
    %1748 = vmatmul.mubr.f32.gmra.mxu0 %v1648
    %v1749 = vpop.f32.mrf.mxu0
    %v1750 = vadd.f32 0.0, %v1749
    %v1751 = vpop.f32.mrf.mxu0
    %1752 = vmatprep.mubr.f32.mxu0 0.0
    %1753 = vmatmul.mubr.f32.gmra.mxu0 %v1651
    %v1754 = vpop.f32.mrf.mxu0
    %v1755 = vadd.f32 0.0, %v1754
    %v1756 = vpop.f32.mrf.mxu0
    %1757 = vdwg.mxu0
    %1758 = vmatprep.subr.mxu0 0.0
    %1759 = vmatpush1.msra.mxu0 %v60
    %1760 = vmatprep.subr.mxu0 0.0
    %1761 = vmatpush1.msra.mxu0 %v59
    %1762 = vmatprep.subr.mxu0 0.0
    %1763 = vmatpush1.msra.mxu0 %v58
    %1764 = vmatprep.subr.mxu0 0.0
    %1765 = vmatpush1.msra.mxu0 %v57
    %1766 = vmatprep.subr.mxu0 0.0
    %1767 = vmatpush1.msra.mxu0 %v56
    %1768 = vmatprep.subr.mxu0 0.0
    %1769 = vmatpush1.msra.mxu0 %v55
    %1770 = vmatprep.subr.mxu0 0.0
    %1771 = vmatpush1.msra.mxu0 %v54
    %1772 = vmatprep.subr.mxu0 0.0
    %1773 = vmatpush1.msra.mxu0 %v53
    %1774 = vmatprep.subr.mxu0 0.0
    %1775 = vmatpush1.msra.mxu0 %v52
    %1776 = vmatprep.subr.mxu0 0.0
    %1777 = vmatpush1.msra.mxu0 %v51
    %1778 = vmatprep.subr.mxu0 0.0
    %1779 = vmatpush1.msra.mxu0 %v50
    %1780 = vmatprep.subr.mxu0 0.0
    %1781 = vmatpush1.msra.mxu0 %v49
    %1782 = vmatprep.subr.mxu0 0.0
    %1783 = vmatpush1.msra.mxu0 %v48
    %1784 = vmatprep.subr.mxu0 0.0
    %1785 = vmatpush1.msra.mxu0 %v47
    %1786 = vmatprep.subr.mxu0 0.0
    %1787 = vmatpush1.msra.mxu0 %v46
    %1788 = vmatprep.subr.mxu0 0.0
    %1789 = vmatpush1.msra.mxu0 %v45
    %1790 = vmatprep.subr.mxu0 0.0
    %1791 = vmatpush2.msra.mxu0 %v76
    %1792 = vmatprep.subr.mxu0 0.0
    %1793 = vmatpush2.msra.mxu0 %v75
    %1794 = vmatprep.subr.mxu0 0.0
    %1795 = vmatpush2.msra.mxu0 %v74
    %1796 = vmatprep.subr.mxu0 0.0
    %1797 = vmatpush2.msra.mxu0 %v73
    %1798 = vmatprep.subr.mxu0 0.0
    %1799 = vmatpush2.msra.mxu0 %v72
    %1800 = vmatprep.subr.mxu0 0.0
    %1801 = vmatpush2.msra.mxu0 %v71
    %1802 = vmatprep.subr.mxu0 0.0
    %1803 = vmatpush2.msra.mxu0 %v70
    %1804 = vmatprep.subr.mxu0 0.0
    %1805 = vmatpush2.msra.mxu0 %v69
    %1806 = vmatprep.subr.mxu0 0.0
    %1807 = vmatpush2.msra.mxu0 %v68
    %1808 = vmatprep.subr.mxu0 0.0
    %1809 = vmatpush2.msra.mxu0 %v67
    %1810 = vmatprep.subr.mxu0 0.0
    %1811 = vmatpush2.msra.mxu0 %v66
    %1812 = vmatprep.subr.mxu0 0.0
    %1813 = vmatpush2.msra.mxu0 %v65
    %1814 = vmatprep.subr.mxu0 0.0
    %1815 = vmatpush2.msra.mxu0 %v64
    %1816 = vmatprep.subr.mxu0 0.0
    %1817 = vmatpush2.msra.mxu0 %v63
    %1818 = vmatprep.subr.mxu0 0.0
    %1819 = vmatpush2.msra.mxu0 %v62
    %1820 = vmatprep.subr.mxu0 0.0
    %1821 = vmatpush2.msra.mxu0 %v61
    %1822 = vmatprep.mubr.f32.mxu0 %v1550
    %1823 = vmatmul.mubr.f32.gmra.mxu0 %v1549
    %v1824 = vpop.f32.mrf.mxu0
    %v1825 = vadd.f32 %v1720, %v1824
    %v1826 = vpop.f32.mrf.mxu0
    %1827 = vmatprep.mubr.f32.mxu0 %v1554
    %1828 = vmatmul.mubr.f32.gmra.mxu0 %v1553
    %v1829 = vpop.f32.mrf.mxu0
    %v1830 = vadd.f32 %v1725, %v1829
    %v1831 = vpop.f32.mrf.mxu0
    %1832 = vmatprep.mubr.f32.mxu0 %v1558
    %1833 = vmatmul.mubr.f32.gmra.mxu0 %v1557
    %v1834 = vpop.f32.mrf.mxu0
    %v1835 = vadd.f32 %v1730, %v1834
    %v1836 = vpop.f32.mrf.mxu0
    %1837 = vmatprep.mubr.f32.mxu0 %v1562
    %1838 = vmatmul.mubr.f32.gmra.mxu0 %v1561
    %v1839 = vpop.f32.mrf.mxu0
    %v1840 = vadd.f32 %v1735, %v1839
    %v1841 = vpop.f32.mrf.mxu0
    %1842 = vmatprep.mubr.f32.mxu0 %v1566
    %1843 = vmatmul.mubr.f32.gmra.mxu0 %v1565
    %v1844 = vpop.f32.mrf.mxu0
    %v1845 = vadd.f32 %v1740, %v1844
    %v1846 = vpop.f32.mrf.mxu0
    %1847 = vmatprep.mubr.f32.mxu0 %v1570
    %1848 = vmatmul.mubr.f32.gmra.mxu0 %v1569
    %v1849 = vpop.f32.mrf.mxu0
    %v1850 = vadd.f32 %v1745, %v1849
    %v1851 = vpop.f32.mrf.mxu0
    %1852 = vmatprep.mubr.f32.mxu0 %v1574
    %1853 = vmatmul.mubr.f32.gmra.mxu0 %v1573
    %v1854 = vpop.f32.mrf.mxu0
    %v1855 = vadd.f32 %v1750, %v1854
    %v1856 = vpop.f32.mrf.mxu0
    %1857 = vmatprep.mubr.f32.mxu0 %v1578
    %1858 = vmatmul.mubr.f32.gmra.mxu0 %v1577
    %v1859 = vpop.f32.mrf.mxu0
    %v1860 = vadd.f32 %v1755, %v1859
    %v1861 = vpop.f32.mrf.mxu0
    %1862 = vdwg.mxu0
    %1863 = vmatprep.subr.mxu0 0.0
    %1864 = vmatpush1.msra.mxu0 %v92
    %1865 = vmatprep.subr.mxu0 0.0
    %1866 = vmatpush1.msra.mxu0 %v91
    %1867 = vmatprep.subr.mxu0 0.0
    %1868 = vmatpush1.msra.mxu0 %v90
    %1869 = vmatprep.subr.mxu0 0.0
    %1870 = vmatpush1.msra.mxu0 %v89
    %1871 = vmatprep.subr.mxu0 0.0
    %1872 = vmatpush1.msra.mxu0 %v88
    %1873 = vmatprep.subr.mxu0 0.0
    %1874 = vmatpush1.msra.mxu0 %v87
    %1875 = vmatprep.subr.mxu0 0.0
    %1876 = vmatpush1.msra.mxu0 %v86
    %1877 = vmatprep.subr.mxu0 0.0
    %1878 = vmatpush1.msra.mxu0 %v85
    %1879 = vmatprep.subr.mxu0 0.0
    %1880 = vmatpush1.msra.mxu0 %v84
    %1881 = vmatprep.subr.mxu0 0.0
    %1882 = vmatpush1.msra.mxu0 %v83
    %1883 = vmatprep.subr.mxu0 0.0
    %1884 = vmatpush1.msra.mxu0 %v82
    %1885 = vmatprep.subr.mxu0 0.0
    %1886 = vmatpush1.msra.mxu0 %v81
    %1887 = vmatprep.subr.mxu0 0.0
    %1888 = vmatpush1.msra.mxu0 %v80
    %1889 = vmatprep.subr.mxu0 0.0
    %1890 = vmatpush1.msra.mxu0 %v79
    %1891 = vmatprep.subr.mxu0 0.0
    %1892 = vmatpush1.msra.mxu0 %v78
    %1893 = vmatprep.subr.mxu0 0.0
    %1894 = vmatpush1.msra.mxu0 %v77
    %1895 = vmatprep.subr.mxu0 0.0
    %1896 = vmatpush2.msra.mxu0 %v108
    %1897 = vmatprep.subr.mxu0 0.0
    %1898 = vmatpush2.msra.mxu0 %v107
    %1899 = vmatprep.subr.mxu0 0.0
    %1900 = vmatpush2.msra.mxu0 %v106
    %1901 = vmatprep.subr.mxu0 0.0
    %1902 = vmatpush2.msra.mxu0 %v105
    %1903 = vmatprep.subr.mxu0 0.0
    %1904 = vmatpush2.msra.mxu0 %v104
    %1905 = vmatprep.subr.mxu0 0.0
    %1906 = vmatpush2.msra.mxu0 %v103
    %1907 = vmatprep.subr.mxu0 0.0
    %1908 = vmatpush2.msra.mxu0 %v102
    %1909 = vmatprep.subr.mxu0 0.0
    %1910 = vmatpush2.msra.mxu0 %v101
    %1911 = vmatprep.subr.mxu0 0.0
    %1912 = vmatpush2.msra.mxu0 %v100
    %1913 = vmatprep.subr.mxu0 0.0
    %1914 = vmatpush2.msra.mxu0 %v99
    %1915 = vmatprep.subr.mxu0 0.0
    %1916 = vmatpush2.msra.mxu0 %v98
    %1917 = vmatprep.subr.mxu0 0.0
    %1918 = vmatpush2.msra.mxu0 %v97
    %1919 = vmatprep.subr.mxu0 0.0
    %1920 = vmatpush2.msra.mxu0 %v96
    %1921 = vmatprep.subr.mxu0 0.0
    %1922 = vmatpush2.msra.mxu0 %v95
    %1923 = vmatprep.subr.mxu0 0.0
    %1924 = vmatpush2.msra.mxu0 %v94
    %1925 = vmatprep.subr.mxu0 0.0
    %1926 = vmatpush2.msra.mxu0 %v93
    %1927 = vmatprep.mubr.f32.mxu0 %v1552
    %1928 = vmatmul.mubr.f32.gmra.mxu0 %v1551
    %v1929 = vpop.f32.mrf.mxu0
    %v1930 = vadd.f32 %v1825, %v1929
    %v1931 = vpop.f32.mrf.mxu0
    %1932 = vmatprep.mubr.f32.mxu0 %v1556
    %1933 = vmatmul.mubr.f32.gmra.mxu0 %v1555
    %v1934 = vpop.f32.mrf.mxu0
    %v1935 = vadd.f32 %v1830, %v1934
    %v1936 = vpop.f32.mrf.mxu0
    %1937 = vmatprep.mubr.f32.mxu0 %v1560
    %1938 = vmatmul.mubr.f32.gmra.mxu0 %v1559
    %v1939 = vpop.f32.mrf.mxu0
    %v1940 = vadd.f32 %v1835, %v1939
    %v1941 = vpop.f32.mrf.mxu0
    %1942 = vmatprep.mubr.f32.mxu0 %v1564
    %1943 = vmatmul.mubr.f32.gmra.mxu0 %v1563
    %v1944 = vpop.f32.mrf.mxu0
    %v1945 = vadd.f32 %v1840, %v1944
    %v1946 = vpop.f32.mrf.mxu0
    %1947 = vmatprep.mubr.f32.mxu0 %v1568
    %1948 = vmatmul.mubr.f32.gmra.mxu0 %v1567
    %v1949 = vpop.f32.mrf.mxu0
    %v1950 = vadd.f32 %v1845, %v1949
    %v1951 = vpop.f32.mrf.mxu0
    %1952 = vmatprep.mubr.f32.mxu0 %v1572
    %1953 = vmatmul.mubr.f32.gmra.mxu0 %v1571
    %v1954 = vpop.f32.mrf.mxu0
    %v1955 = vadd.f32 %v1850, %v1954
    %v1956 = vpop.f32.mrf.mxu0
    %1957 = vmatprep.mubr.f32.mxu0 %v1576
    %1958 = vmatmul.mubr.f32.gmra.mxu0 %v1575
    %v1959 = vpop.f32.mrf.mxu0
    %v1960 = vadd.f32 %v1855, %v1959
    %v1961 = vpop.f32.mrf.mxu0
    %1962 = vmatprep.mubr.f32.mxu0 %v1580
    %1963 = vmatmul.mubr.f32.gmra.mxu0 %v1579
    %v1964 = vpop.f32.mrf.mxu0
    %v1965 = vadd.f32 %v1860, %v1964
    %v1966 = vpop.f32.mrf.mxu0
    %1967 = vdwg.mxu0
    %1968 = vadd.xlane.f32.xlu0 %v1930
    %v1969 = vpop.xlane.xlu0 %1968
    %1970 = vadd.xlane.f32.xlu0 %v1935
    %v1971 = vpop.xlane.xlu0 %1970
    %1972 = vadd.xlane.f32.xlu0 %v1940
    %v1973 = vpop.xlane.xlu0 %1972
    %1974 = vadd.xlane.f32.xlu0 %v1945
    %v1975 = vpop.xlane.xlu0 %1974
    %1976 = vadd.xlane.f32.xlu0 %v1950
    %v1977 = vpop.xlane.xlu0 %1976
    %1978 = vadd.xlane.f32.xlu0 %v1955
    %v1979 = vpop.xlane.xlu0 %1978
    %1980 = vadd.xlane.f32.xlu0 %v1960
    %v1981 = vpop.xlane.xlu0 %1980
    %1982 = vadd.xlane.f32.xlu0 %v1965
    %v1983 = vpop.xlane.xlu0 %1982
    %v1984 = vmul.f32 %v1969, %v653
    %v1985 = vmul.f32 %v1971, %v653
    %v1986 = vmul.f32 %v1973, %v653
    %v1987 = vmul.f32 %v1975, %v653
    %v1988 = vmul.f32 %v1977, %v653
    %v1989 = vmul.f32 %v1979, %v653
    %v1990 = vmul.f32 %v1981, %v653
    %v1991 = vmul.f32 %v1983, %v653
    %v1992 = vmul.f32 %v1930, %v1930
    %v1993 = vmul.f32 %v1935, %v1935
    %v1994 = vmul.f32 %v1940, %v1940
    %v1995 = vmul.f32 %v1945, %v1945
    %v1996 = vmul.f32 %v1950, %v1950
    %v1997 = vmul.f32 %v1955, %v1955
    %v1998 = vmul.f32 %v1960, %v1960
    %v1999 = vmul.f32 %v1965, %v1965
    %2000 = vadd.xlane.f32.xlu0 %v1992
    %v2001 = vpop.xlane.xlu0 %2000
    %2002 = vadd.xlane.f32.xlu0 %v1993
    %v2003 = vpop.xlane.xlu0 %2002
    %2004 = vadd.xlane.f32.xlu0 %v1994
    %v2005 = vpop.xlane.xlu0 %2004
    %2006 = vadd.xlane.f32.xlu0 %v1995
    %v2007 = vpop.xlane.xlu0 %2006
    %2008 = vadd.xlane.f32.xlu0 %v1996
    %v2009 = vpop.xlane.xlu0 %2008
    %2010 = vadd.xlane.f32.xlu0 %v1997
    %v2011 = vpop.xlane.xlu0 %2010
    %2012 = vadd.xlane.f32.xlu0 %v1998
    %v2013 = vpop.xlane.xlu0 %2012
    %2014 = vadd.xlane.f32.xlu0 %v1999
    %v2015 = vpop.xlane.xlu0 %2014
    %v2016 = vmul.f32 %v2001, %v653
    %v2017 = vmul.f32 %v2003, %v653
    %v2018 = vmul.f32 %v2005, %v653
    %v2019 = vmul.f32 %v2007, %v653
    %v2020 = vmul.f32 %v2009, %v653
    %v2021 = vmul.f32 %v2011, %v653
    %v2022 = vmul.f32 %v2013, %v653
    %v2023 = vmul.f32 %v2015, %v653
    %v2024 = vmul.f32 %v1984, %v1984
    %v2025 = vmul.f32 %v1985, %v1985
    %v2026 = vmul.f32 %v1986, %v1986
    %v2027 = vmul.f32 %v1987, %v1987
    %v2028 = vmul.f32 %v1988, %v1988
    %v2029 = vmul.f32 %v1989, %v1989
    %v2030 = vmul.f32 %v1990, %v1990
    %v2031 = vmul.f32 %v1991, %v1991
    %v2032 = vsub.f32 %v2016, %v2024
    %v2033 = vsub.f32 %v2017, %v2025
    %v2034 = vsub.f32 %v2018, %v2026
    %v2035 = vsub.f32 %v2019, %v2027
    %v2036 = vsub.f32 %v2020, %v2028
    %v2037 = vsub.f32 %v2021, %v2029
    %v2038 = vsub.f32 %v2022, %v2030
    %v2039 = vsub.f32 %v2023, %v2031
    %v2040 = vmax.f32 %v2032, 0.0
    %v2041 = vmax.f32 %v2033, 0.0
    %v2042 = vmax.f32 %v2034, 0.0
    %v2043 = vmax.f32 %v2035, 0.0
    %v2044 = vmax.f32 %v2036, 0.0
    %v2045 = vmax.f32 %v2037, 0.0
    %v2046 = vmax.f32 %v2038, 0.0
    %v2047 = vmax.f32 %v2039, 0.0
    %v2048 = vadd.f32 %v2040, 1e-12
    %v2049 = vadd.f32 %v2041, 1e-12
    %v2050 = vadd.f32 %v2042, 1e-12
    %v2051 = vadd.f32 %v2043, 1e-12
    %v2052 = vadd.f32 %v2044, 1e-12
    %v2053 = vadd.f32 %v2045, 1e-12
    %v2054 = vadd.f32 %v2046, 1e-12
    %v2055 = vadd.f32 %v2047, 1e-12
    %v2056 = vrsqrt.pop %v2048
    %v2057 = vrsqrt.pop %v2049
    %v2058 = vrsqrt.pop %v2050
    %v2059 = vrsqrt.pop %v2051
    %v2060 = vrsqrt.pop %v2052
    %v2061 = vrsqrt.pop %v2053
    %v2062 = vrsqrt.pop %v2054
    %v2063 = vrsqrt.pop %v2055
    %v2064 = vsub.f32 %v1930, %v1984
    %v2065 = vsub.f32 %v1935, %v1985
    %v2066 = vsub.f32 %v1940, %v1986
    %v2067 = vsub.f32 %v1945, %v1987
    %v2068 = vsub.f32 %v1950, %v1988
    %v2069 = vsub.f32 %v1955, %v1989
    %v2070 = vsub.f32 %v1960, %v1990
    %v2071 = vsub.f32 %v1965, %v1991
    %v2072 = vmul.f32 %v2064, %v2056
    %v2073 = vmul.f32 %v2065, %v2057
    %v2074 = vmul.f32 %v2066, %v2058
    %v2075 = vmul.f32 %v2067, %v2059
    %v2076 = vmul.f32 %v2068, %v2060
    %v2077 = vmul.f32 %v2069, %v2061
    %v2078 = vmul.f32 %v2070, %v2062
    %v2079 = vmul.f32 %v2071, %v2063
    %v2080 = vmul.f32 %v2072, %v754
    %v2081 = vmul.f32 %v2073, %v754
    %v2082 = vmul.f32 %v2074, %v754
    %v2083 = vmul.f32 %v2075, %v754
    %v2084 = vmul.f32 %v2076, %v754
    %v2085 = vmul.f32 %v2077, %v754
    %v2086 = vmul.f32 %v2078, %v754
    %v2087 = vmul.f32 %v2079, %v754
    %v2088 = vadd.f32 %v2080, %v768
    %v2089 = vadd.f32 %v2081, %v768
    %v2090 = vadd.f32 %v2082, %v768
    %v2091 = vadd.f32 %v2083, %v768
    %v2092 = vadd.f32 %v2084, %v768
    %v2093 = vadd.f32 %v2085, %v768
    %v2094 = vadd.f32 %v2086, %v768
    %v2095 = vadd.f32 %v2087, %v768
    %2096 = vst [vmem:[#allocation5 + $0x80] sm:$0xff] %v2088
    %2097 = vst [vmem:[#allocation5 + $0x88] sm:$0xff] %v2089
    %2098 = vst [vmem:[#allocation5 + $0x90] sm:$0xff] %v2090
    %2099 = vst [vmem:[#allocation5 + $0x98] sm:$0xff] %v2091
    %2100 = vst [vmem:[#allocation5 + $0xa0] sm:$0xff] %v2092
    %2101 = vst [vmem:[#allocation5 + $0xa8] sm:$0xff] %v2093
    %2102 = vst [vmem:[#allocation5 + $0xb0] sm:$0xff] %v2094
    %2103 = vst [vmem:[#allocation5 + $0xb8] sm:$0xff] %v2095
    %v2104 = vld [vmem:[%s0 + $0xc0] sm:$0xff]
    %v2105 = vld [vmem:[%s0 + $0xc8] sm:$0xff]
    %v2106 = vld [vmem:[%s0 + $0xd0] sm:$0xff]
    %v2107 = vld [vmem:[%s0 + $0xd8] sm:$0xff]
    %v2108 = vld [vmem:[%s0 + $0xe0] sm:$0xff]
    %v2109 = vld [vmem:[%s0 + $0xe8] sm:$0xff]
    %v2110 = vld [vmem:[%s0 + $0xf0] sm:$0xff]
    %v2111 = vld [vmem:[%s0 + $0xf8] sm:$0xff]
    %v2112 = vld [vmem:[%s1 + $0xc0] sm:$0xff]
    %v2113 = vld [vmem:[%s1 + $0xc8] sm:$0xff]
    %v2114 = vld [vmem:[%s1 + $0xd0] sm:$0xff]
    %v2115 = vld [vmem:[%s1 + $0xd8] sm:$0xff]
    %v2116 = vld [vmem:[%s1 + $0xe0] sm:$0xff]
    %v2117 = vld [vmem:[%s1 + $0xe8] sm:$0xff]
    %v2118 = vld [vmem:[%s1 + $0xf0] sm:$0xff]
    %v2119 = vld [vmem:[%s1 + $0xf8] sm:$0xff]
    %2120 = vset.pattern.permute.xlu0 0
    %2121 = vperm.xlu0 %2120, %v2104
    %v2122 = vpop.permute.xlu0 %2121
    %2123 = vset.pattern.permute.xlu0 0
    %2124 = vperm.xlu0 %2123, %v2105
    %v2125 = vpop.permute.xlu0 %2124
    %2126 = vset.pattern.permute.xlu0 0
    %2127 = vperm.xlu0 %2126, %v2106
    %v2128 = vpop.permute.xlu0 %2127
    %2129 = vset.pattern.permute.xlu0 0
    %2130 = vperm.xlu0 %2129, %v2107
    %v2131 = vpop.permute.xlu0 %2130
    %2132 = vset.pattern.permute.xlu0 0
    %2133 = vperm.xlu0 %2132, %v2108
    %v2134 = vpop.permute.xlu0 %2133
    %2135 = vset.pattern.permute.xlu0 0
    %2136 = vperm.xlu0 %2135, %v2109
    %v2137 = vpop.permute.xlu0 %2136
    %2138 = vset.pattern.permute.xlu0 0
    %2139 = vperm.xlu0 %2138, %v2110
    %v2140 = vpop.permute.xlu0 %2139
    %2141 = vset.pattern.permute.xlu0 0
    %2142 = vperm.xlu0 %2141, %v2111
    %v2143 = vpop.permute.xlu0 %2142
    %vm2144 = vcmp.eq.s32.totalorder %v2122, %v39
    %vm2145 = vcmp.eq.s32.totalorder %v2122, %v40
    %vm2146 = vcmp.eq.s32.totalorder %v2122, %v41
    %vm2147 = vcmp.eq.s32.totalorder %v2122, %v42
    %vm2148 = vcmp.eq.s32.totalorder %v2125, %v39
    %vm2149 = vcmp.eq.s32.totalorder %v2125, %v40
    %vm2150 = vcmp.eq.s32.totalorder %v2125, %v41
    %vm2151 = vcmp.eq.s32.totalorder %v2125, %v42
    %vm2152 = vcmp.eq.s32.totalorder %v2128, %v39
    %vm2153 = vcmp.eq.s32.totalorder %v2128, %v40
    %vm2154 = vcmp.eq.s32.totalorder %v2128, %v41
    %vm2155 = vcmp.eq.s32.totalorder %v2128, %v42
    %vm2156 = vcmp.eq.s32.totalorder %v2131, %v39
    %vm2157 = vcmp.eq.s32.totalorder %v2131, %v40
    %vm2158 = vcmp.eq.s32.totalorder %v2131, %v41
    %vm2159 = vcmp.eq.s32.totalorder %v2131, %v42
    %vm2160 = vcmp.eq.s32.totalorder %v2134, %v39
    %vm2161 = vcmp.eq.s32.totalorder %v2134, %v40
    %vm2162 = vcmp.eq.s32.totalorder %v2134, %v41
    %vm2163 = vcmp.eq.s32.totalorder %v2134, %v42
    %vm2164 = vcmp.eq.s32.totalorder %v2137, %v39
    %vm2165 = vcmp.eq.s32.totalorder %v2137, %v40
    %vm2166 = vcmp.eq.s32.totalorder %v2137, %v41
    %vm2167 = vcmp.eq.s32.totalorder %v2137, %v42
    %vm2168 = vcmp.eq.s32.totalorder %v2140, %v39
    %vm2169 = vcmp.eq.s32.totalorder %v2140, %v40
    %vm2170 = vcmp.eq.s32.totalorder %v2140, %v41
    %vm2171 = vcmp.eq.s32.totalorder %v2140, %v42
    %vm2172 = vcmp.eq.s32.totalorder %v2143, %v39
    %vm2173 = vcmp.eq.s32.totalorder %v2143, %v40
    %vm2174 = vcmp.eq.s32.totalorder %v2143, %v41
    %vm2175 = vcmp.eq.s32.totalorder %v2143, %v42
    %v2176 = vsel %vm2144, 1, 0
    %v2177 = vsel %vm2145, 1, 0
    %v2178 = vsel %vm2146, 1, 0
    %v2179 = vsel %vm2147, 1, 0
    %v2180 = vsel %vm2148, 1, 0
    %v2181 = vsel %vm2149, 1, 0
    %v2182 = vsel %vm2150, 1, 0
    %v2183 = vsel %vm2151, 1, 0
    %v2184 = vsel %vm2152, 1, 0
    %v2185 = vsel %vm2153, 1, 0
    %v2186 = vsel %vm2154, 1, 0
    %v2187 = vsel %vm2155, 1, 0
    %v2188 = vsel %vm2156, 1, 0
    %v2189 = vsel %vm2157, 1, 0
    %v2190 = vsel %vm2158, 1, 0
    %v2191 = vsel %vm2159, 1, 0
    %v2192 = vsel %vm2160, 1, 0
    %v2193 = vsel %vm2161, 1, 0
    %v2194 = vsel %vm2162, 1, 0
    %v2195 = vsel %vm2163, 1, 0
    %v2196 = vsel %vm2164, 1, 0
    %v2197 = vsel %vm2165, 1, 0
    %v2198 = vsel %vm2166, 1, 0
    %v2199 = vsel %vm2167, 1, 0
    %v2200 = vsel %vm2168, 1, 0
    %v2201 = vsel %vm2169, 1, 0
    %v2202 = vsel %vm2170, 1, 0
    %v2203 = vsel %vm2171, 1, 0
    %v2204 = vsel %vm2172, 1, 0
    %v2205 = vsel %vm2173, 1, 0
    %v2206 = vsel %vm2174, 1, 0
    %v2207 = vsel %vm2175, 1, 0
    %v2208 = vcvt.s32.f32 %v2176
    %v2209 = vcvt.s32.f32 %v2177
    %v2210 = vcvt.s32.f32 %v2178
    %v2211 = vcvt.s32.f32 %v2179
    %v2212 = vcvt.s32.f32 %v2180
    %v2213 = vcvt.s32.f32 %v2181
    %v2214 = vcvt.s32.f32 %v2182
    %v2215 = vcvt.s32.f32 %v2183
    %v2216 = vcvt.s32.f32 %v2184
    %v2217 = vcvt.s32.f32 %v2185
    %v2218 = vcvt.s32.f32 %v2186
    %v2219 = vcvt.s32.f32 %v2187
    %v2220 = vcvt.s32.f32 %v2188
    %v2221 = vcvt.s32.f32 %v2189
    %v2222 = vcvt.s32.f32 %v2190
    %v2223 = vcvt.s32.f32 %v2191
    %v2224 = vcvt.s32.f32 %v2192
    %v2225 = vcvt.s32.f32 %v2193
    %v2226 = vcvt.s32.f32 %v2194
    %v2227 = vcvt.s32.f32 %v2195
    %v2228 = vcvt.s32.f32 %v2196
    %v2229 = vcvt.s32.f32 %v2197
    %v2230 = vcvt.s32.f32 %v2198
    %v2231 = vcvt.s32.f32 %v2199
    %v2232 = vcvt.s32.f32 %v2200
    %v2233 = vcvt.s32.f32 %v2201
    %v2234 = vcvt.s32.f32 %v2202
    %v2235 = vcvt.s32.f32 %v2203
    %v2236 = vcvt.s32.f32 %v2204
    %v2237 = vcvt.s32.f32 %v2205
    %v2238 = vcvt.s32.f32 %v2206
    %v2239 = vcvt.s32.f32 %v2207
    %2240 = vset.pattern.permute.xlu0 0
    %2241 = vperm.xlu0 %2240, %v2112
    %v2242 = vpop.permute.xlu0 %2241
    %2243 = vset.pattern.permute.xlu0 0
    %2244 = vperm.xlu0 %2243, %v2113
    %v2245 = vpop.permute.xlu0 %2244
    %2246 = vset.pattern.permute.xlu0 0
    %2247 = vperm.xlu0 %2246, %v2114
    %v2248 = vpop.permute.xlu0 %2247
    %2249 = vset.pattern.permute.xlu0 0
    %2250 = vperm.xlu0 %2249, %v2115
    %v2251 = vpop.permute.xlu0 %2250
    %2252 = vset.pattern.permute.xlu0 0
    %2253 = vperm.xlu0 %2252, %v2116
    %v2254 = vpop.permute.xlu0 %2253
    %2255 = vset.pattern.permute.xlu0 0
    %2256 = vperm.xlu0 %2255, %v2117
    %v2257 = vpop.permute.xlu0 %2256
    %2258 = vset.pattern.permute.xlu0 0
    %2259 = vperm.xlu0 %2258, %v2118
    %v2260 = vpop.permute.xlu0 %2259
    %2261 = vset.pattern.permute.xlu0 0
    %2262 = vperm.xlu0 %2261, %v2119
    %v2263 = vpop.permute.xlu0 %2262
    %vm2264 = vcmp.eq.s32.totalorder %v2242, %v39
    %vm2265 = vcmp.eq.s32.totalorder %v2245, %v39
    %vm2266 = vcmp.eq.s32.totalorder %v2248, %v39
    %vm2267 = vcmp.eq.s32.totalorder %v2251, %v39
    %vm2268 = vcmp.eq.s32.totalorder %v2254, %v39
    %vm2269 = vcmp.eq.s32.totalorder %v2257, %v39
    %vm2270 = vcmp.eq.s32.totalorder %v2260, %v39
    %vm2271 = vcmp.eq.s32.totalorder %v2263, %v39
    %v2272 = vsel %vm2264, 1, 0
    %v2273 = vsel %vm2265, 1, 0
    %v2274 = vsel %vm2266, 1, 0
    %v2275 = vsel %vm2267, 1, 0
    %v2276 = vsel %vm2268, 1, 0
    %v2277 = vsel %vm2269, 1, 0
    %v2278 = vsel %vm2270, 1, 0
    %v2279 = vsel %vm2271, 1, 0
    %v2280 = vcvt.s32.f32 %v2272
    %v2281 = vcvt.s32.f32 %v2273
    %v2282 = vcvt.s32.f32 %v2274
    %v2283 = vcvt.s32.f32 %v2275
    %v2284 = vcvt.s32.f32 %v2276
    %v2285 = vcvt.s32.f32 %v2277
    %v2286 = vcvt.s32.f32 %v2278
    %v2287 = vcvt.s32.f32 %v2279
    %v2289 = vsel %vm297, %v2280, 0
    %v2292 = vsel %vm297, %v2281, 0
    %v2295 = vsel %vm297, %v2282, 0
    %v2298 = vsel %vm297, %v2283, 0
    %v2301 = vsel %vm297, %v2284, 0
    %v2304 = vsel %vm297, %v2285, 0
    %v2307 = vsel %vm297, %v2286, 0
    %v2310 = vsel %vm297, %v2287, 0
    %2312 = vmatprep.subr.mxu0 0.0
    %2313 = vmatpush1.msra.mxu0 0.0
    %2314 = vmatprep.subr.mxu0 0.0
    %2315 = vmatpush1.msra.mxu0 0.0
    %2316 = vmatprep.subr.mxu0 0.0
    %2317 = vmatpush1.msra.mxu0 0.0
    %2318 = vmatprep.subr.mxu0 0.0
    %2319 = vmatpush1.msra.mxu0 0.0
    %2320 = vmatprep.subr.mxu0 0.0
    %2321 = vmatpush1.msra.mxu0 0.0
    %2322 = vmatprep.subr.mxu0 0.0
    %2323 = vmatpush1.msra.mxu0 0.0
    %2324 = vmatprep.subr.mxu0 0.0
    %2325 = vmatpush1.msra.mxu0 0.0
    %2326 = vmatprep.subr.mxu0 0.0
    %2327 = vmatpush1.msra.mxu0 0.0
    %2328 = vmatprep.subr.mxu0 0.0
    %2329 = vmatpush1.msra.mxu0 0.0
    %2330 = vmatprep.subr.mxu0 0.0
    %2331 = vmatpush1.msra.mxu0 0.0
    %2332 = vmatprep.subr.mxu0 0.0
    %2333 = vmatpush1.msra.mxu0 0.0
    %2334 = vmatprep.subr.mxu0 0.0
    %2335 = vmatpush1.msra.mxu0 0.0
    %2336 = vmatprep.subr.mxu0 0.0
    %2337 = vmatpush1.msra.mxu0 %v112
    %2338 = vmatprep.subr.mxu0 0.0
    %2339 = vmatpush1.msra.mxu0 %v111
    %2340 = vmatprep.subr.mxu0 0.0
    %2341 = vmatpush1.msra.mxu0 %v110
    %2342 = vmatprep.subr.mxu0 0.0
    %2343 = vmatpush1.msra.mxu0 %v109
    %2344 = vmatprep.subr.mxu0 0.0
    %2345 = vmatpush2.msra.mxu0 0.0
    %2346 = vmatprep.subr.mxu0 0.0
    %2347 = vmatpush2.msra.mxu0 0.0
    %2348 = vmatprep.subr.mxu0 0.0
    %2349 = vmatpush2.msra.mxu0 0.0
    %2350 = vmatprep.subr.mxu0 0.0
    %2351 = vmatpush2.msra.mxu0 0.0
    %2352 = vmatprep.subr.mxu0 0.0
    %2353 = vmatpush2.msra.mxu0 0.0
    %2354 = vmatprep.subr.mxu0 0.0
    %2355 = vmatpush2.msra.mxu0 0.0
    %2356 = vmatprep.subr.mxu0 0.0
    %2357 = vmatpush2.msra.mxu0 0.0
    %2358 = vmatprep.subr.mxu0 0.0
    %2359 = vmatpush2.msra.mxu0 0.0
    %2360 = vmatprep.subr.mxu0 0.0
    %2361 = vmatpush2.msra.mxu0 0.0
    %2362 = vmatprep.subr.mxu0 0.0
    %2363 = vmatpush2.msra.mxu0 0.0
    %2364 = vmatprep.subr.mxu0 0.0
    %2365 = vmatpush2.msra.mxu0 0.0
    %2366 = vmatprep.subr.mxu0 0.0
    %2367 = vmatpush2.msra.mxu0 0.0
    %2368 = vmatprep.subr.mxu0 0.0
    %2369 = vmatpush2.msra.mxu0 0.0
    %2370 = vmatprep.subr.mxu0 0.0
    %2371 = vmatpush2.msra.mxu0 0.0
    %2372 = vmatprep.subr.mxu0 0.0
    %2373 = vmatpush2.msra.mxu0 0.0
    %2374 = vmatprep.subr.mxu0 0.0
    %2375 = vmatpush2.msra.mxu0 0.0
    %2376 = vmatprep.mubr.f32.mxu0 0.0
    %2377 = vmatmul.mubr.f32.gmra.mxu0 %v2289
    %v2378 = vpop.f32.mrf.mxu0
    %v2379 = vadd.f32 0.0, %v2378
    %v2380 = vpop.f32.mrf.mxu0
    %2381 = vmatprep.mubr.f32.mxu0 0.0
    %2382 = vmatmul.mubr.f32.gmra.mxu0 %v2292
    %v2383 = vpop.f32.mrf.mxu0
    %v2384 = vadd.f32 0.0, %v2383
    %v2385 = vpop.f32.mrf.mxu0
    %2386 = vmatprep.mubr.f32.mxu0 0.0
    %2387 = vmatmul.mubr.f32.gmra.mxu0 %v2295
    %v2388 = vpop.f32.mrf.mxu0
    %v2389 = vadd.f32 0.0, %v2388
    %v2390 = vpop.f32.mrf.mxu0
    %2391 = vmatprep.mubr.f32.mxu0 0.0
    %2392 = vmatmul.mubr.f32.gmra.mxu0 %v2298
    %v2393 = vpop.f32.mrf.mxu0
    %v2394 = vadd.f32 0.0, %v2393
    %v2395 = vpop.f32.mrf.mxu0
    %2396 = vmatprep.mubr.f32.mxu0 0.0
    %2397 = vmatmul.mubr.f32.gmra.mxu0 %v2301
    %v2398 = vpop.f32.mrf.mxu0
    %v2399 = vadd.f32 0.0, %v2398
    %v2400 = vpop.f32.mrf.mxu0
    %2401 = vmatprep.mubr.f32.mxu0 0.0
    %2402 = vmatmul.mubr.f32.gmra.mxu0 %v2304
    %v2403 = vpop.f32.mrf.mxu0
    %v2404 = vadd.f32 0.0, %v2403
    %v2405 = vpop.f32.mrf.mxu0
    %2406 = vmatprep.mubr.f32.mxu0 0.0
    %2407 = vmatmul.mubr.f32.gmra.mxu0 %v2307
    %v2408 = vpop.f32.mrf.mxu0
    %v2409 = vadd.f32 0.0, %v2408
    %v2410 = vpop.f32.mrf.mxu0
    %2411 = vmatprep.mubr.f32.mxu0 0.0
    %2412 = vmatmul.mubr.f32.gmra.mxu0 %v2310
    %v2413 = vpop.f32.mrf.mxu0
    %v2414 = vadd.f32 0.0, %v2413
    %v2415 = vpop.f32.mrf.mxu0
    %2416 = vdwg.mxu0
    %2417 = vmatprep.subr.mxu0 0.0
    %2418 = vmatpush1.msra.mxu0 %v60
    %2419 = vmatprep.subr.mxu0 0.0
    %2420 = vmatpush1.msra.mxu0 %v59
    %2421 = vmatprep.subr.mxu0 0.0
    %2422 = vmatpush1.msra.mxu0 %v58
    %2423 = vmatprep.subr.mxu0 0.0
    %2424 = vmatpush1.msra.mxu0 %v57
    %2425 = vmatprep.subr.mxu0 0.0
    %2426 = vmatpush1.msra.mxu0 %v56
    %2427 = vmatprep.subr.mxu0 0.0
    %2428 = vmatpush1.msra.mxu0 %v55
    %2429 = vmatprep.subr.mxu0 0.0
    %2430 = vmatpush1.msra.mxu0 %v54
    %2431 = vmatprep.subr.mxu0 0.0
    %2432 = vmatpush1.msra.mxu0 %v53
    %2433 = vmatprep.subr.mxu0 0.0
    %2434 = vmatpush1.msra.mxu0 %v52
    %2435 = vmatprep.subr.mxu0 0.0
    %2436 = vmatpush1.msra.mxu0 %v51
    %2437 = vmatprep.subr.mxu0 0.0
    %2438 = vmatpush1.msra.mxu0 %v50
    %2439 = vmatprep.subr.mxu0 0.0
    %2440 = vmatpush1.msra.mxu0 %v49
    %2441 = vmatprep.subr.mxu0 0.0
    %2442 = vmatpush1.msra.mxu0 %v48
    %2443 = vmatprep.subr.mxu0 0.0
    %2444 = vmatpush1.msra.mxu0 %v47
    %2445 = vmatprep.subr.mxu0 0.0
    %2446 = vmatpush1.msra.mxu0 %v46
    %2447 = vmatprep.subr.mxu0 0.0
    %2448 = vmatpush1.msra.mxu0 %v45
    %2449 = vmatprep.subr.mxu0 0.0
    %2450 = vmatpush2.msra.mxu0 %v76
    %2451 = vmatprep.subr.mxu0 0.0
    %2452 = vmatpush2.msra.mxu0 %v75
    %2453 = vmatprep.subr.mxu0 0.0
    %2454 = vmatpush2.msra.mxu0 %v74
    %2455 = vmatprep.subr.mxu0 0.0
    %2456 = vmatpush2.msra.mxu0 %v73
    %2457 = vmatprep.subr.mxu0 0.0
    %2458 = vmatpush2.msra.mxu0 %v72
    %2459 = vmatprep.subr.mxu0 0.0
    %2460 = vmatpush2.msra.mxu0 %v71
    %2461 = vmatprep.subr.mxu0 0.0
    %2462 = vmatpush2.msra.mxu0 %v70
    %2463 = vmatprep.subr.mxu0 0.0
    %2464 = vmatpush2.msra.mxu0 %v69
    %2465 = vmatprep.subr.mxu0 0.0
    %2466 = vmatpush2.msra.mxu0 %v68
    %2467 = vmatprep.subr.mxu0 0.0
    %2468 = vmatpush2.msra.mxu0 %v67
    %2469 = vmatprep.subr.mxu0 0.0
    %2470 = vmatpush2.msra.mxu0 %v66
    %2471 = vmatprep.subr.mxu0 0.0
    %2472 = vmatpush2.msra.mxu0 %v65
    %2473 = vmatprep.subr.mxu0 0.0
    %2474 = vmatpush2.msra.mxu0 %v64
    %2475 = vmatprep.subr.mxu0 0.0
    %2476 = vmatpush2.msra.mxu0 %v63
    %2477 = vmatprep.subr.mxu0 0.0
    %2478 = vmatpush2.msra.mxu0 %v62
    %2479 = vmatprep.subr.mxu0 0.0
    %2480 = vmatpush2.msra.mxu0 %v61
    %2481 = vmatprep.mubr.f32.mxu0 %v2209
    %2482 = vmatmul.mubr.f32.gmra.mxu0 %v2208
    %v2483 = vpop.f32.mrf.mxu0
    %v2484 = vadd.f32 %v2379, %v2483
    %v2485 = vpop.f32.mrf.mxu0
    %2486 = vmatprep.mubr.f32.mxu0 %v2213
    %2487 = vmatmul.mubr.f32.gmra.mxu0 %v2212
    %v2488 = vpop.f32.mrf.mxu0
    %v2489 = vadd.f32 %v2384, %v2488
    %v2490 = vpop.f32.mrf.mxu0
    %2491 = vmatprep.mubr.f32.mxu0 %v2217
    %2492 = vmatmul.mubr.f32.gmra.mxu0 %v2216
    %v2493 = vpop.f32.mrf.mxu0
    %v2494 = vadd.f32 %v2389, %v2493
    %v2495 = vpop.f32.mrf.mxu0
    %2496 = vmatprep.mubr.f32.mxu0 %v2221
    %2497 = vmatmul.mubr.f32.gmra.mxu0 %v2220
    %v2498 = vpop.f32.mrf.mxu0
    %v2499 = vadd.f32 %v2394, %v2498
    %v2500 = vpop.f32.mrf.mxu0
    %2501 = vmatprep.mubr.f32.mxu0 %v2225
    %2502 = vmatmul.mubr.f32.gmra.mxu0 %v2224
    %v2503 = vpop.f32.mrf.mxu0
    %v2504 = vadd.f32 %v2399, %v2503
    %v2505 = vpop.f32.mrf.mxu0
    %2506 = vmatprep.mubr.f32.mxu0 %v2229
    %2507 = vmatmul.mubr.f32.gmra.mxu0 %v2228
    %v2508 = vpop.f32.mrf.mxu0
    %v2509 = vadd.f32 %v2404, %v2508
    %v2510 = vpop.f32.mrf.mxu0
    %2511 = vmatprep.mubr.f32.mxu0 %v2233
    %2512 = vmatmul.mubr.f32.gmra.mxu0 %v2232
    %v2513 = vpop.f32.mrf.mxu0
    %v2514 = vadd.f32 %v2409, %v2513
    %v2515 = vpop.f32.mrf.mxu0
    %2516 = vmatprep.mubr.f32.mxu0 %v2237
    %2517 = vmatmul.mubr.f32.gmra.mxu0 %v2236
    %v2518 = vpop.f32.mrf.mxu0
    %v2519 = vadd.f32 %v2414, %v2518
    %v2520 = vpop.f32.mrf.mxu0
    %2521 = vdwg.mxu0
    %2522 = vmatprep.subr.mxu0 0.0
    %2523 = vmatpush1.msra.mxu0 %v92
    %2524 = vmatprep.subr.mxu0 0.0
    %2525 = vmatpush1.msra.mxu0 %v91
    %2526 = vmatprep.subr.mxu0 0.0
    %2527 = vmatpush1.msra.mxu0 %v90
    %2528 = vmatprep.subr.mxu0 0.0
    %2529 = vmatpush1.msra.mxu0 %v89
    %2530 = vmatprep.subr.mxu0 0.0
    %2531 = vmatpush1.msra.mxu0 %v88
    %2532 = vmatprep.subr.mxu0 0.0
    %2533 = vmatpush1.msra.mxu0 %v87
    %2534 = vmatprep.subr.mxu0 0.0
    %2535 = vmatpush1.msra.mxu0 %v86
    %2536 = vmatprep.subr.mxu0 0.0
    %2537 = vmatpush1.msra.mxu0 %v85
    %2538 = vmatprep.subr.mxu0 0.0
    %2539 = vmatpush1.msra.mxu0 %v84
    %2540 = vmatprep.subr.mxu0 0.0
    %2541 = vmatpush1.msra.mxu0 %v83
    %2542 = vmatprep.subr.mxu0 0.0
    %2543 = vmatpush1.msra.mxu0 %v82
    %2544 = vmatprep.subr.mxu0 0.0
    %2545 = vmatpush1.msra.mxu0 %v81
    %2546 = vmatprep.subr.mxu0 0.0
    %2547 = vmatpush1.msra.mxu0 %v80
    %2548 = vmatprep.subr.mxu0 0.0
    %2549 = vmatpush1.msra.mxu0 %v79
    %2550 = vmatprep.subr.mxu0 0.0
    %2551 = vmatpush1.msra.mxu0 %v78
    %2552 = vmatprep.subr.mxu0 0.0
    %2553 = vmatpush1.msra.mxu0 %v77
    %2554 = vmatprep.subr.mxu0 0.0
    %2555 = vmatpush2.msra.mxu0 %v108
    %2556 = vmatprep.subr.mxu0 0.0
    %2557 = vmatpush2.msra.mxu0 %v107
    %2558 = vmatprep.subr.mxu0 0.0
    %2559 = vmatpush2.msra.mxu0 %v106
    %2560 = vmatprep.subr.mxu0 0.0
    %2561 = vmatpush2.msra.mxu0 %v105
    %2562 = vmatprep.subr.mxu0 0.0
    %2563 = vmatpush2.msra.mxu0 %v104
    %2564 = vmatprep.subr.mxu0 0.0
    %2565 = vmatpush2.msra.mxu0 %v103
    %2566 = vmatprep.subr.mxu0 0.0
    %2567 = vmatpush2.msra.mxu0 %v102
    %2568 = vmatprep.subr.mxu0 0.0
    %2569 = vmatpush2.msra.mxu0 %v101
    %2570 = vmatprep.subr.mxu0 0.0
    %2571 = vmatpush2.msra.mxu0 %v100
    %2572 = vmatprep.subr.mxu0 0.0
    %2573 = vmatpush2.msra.mxu0 %v99
    %2574 = vmatprep.subr.mxu0 0.0
    %2575 = vmatpush2.msra.mxu0 %v98
    %2576 = vmatprep.subr.mxu0 0.0
    %2577 = vmatpush2.msra.mxu0 %v97
    %2578 = vmatprep.subr.mxu0 0.0
    %2579 = vmatpush2.msra.mxu0 %v96
    %2580 = vmatprep.subr.mxu0 0.0
    %2581 = vmatpush2.msra.mxu0 %v95
    %2582 = vmatprep.subr.mxu0 0.0
    %2583 = vmatpush2.msra.mxu0 %v94
    %2584 = vmatprep.subr.mxu0 0.0
    %2585 = vmatpush2.msra.mxu0 %v93
    %2586 = vmatprep.mubr.f32.mxu0 %v2211
    %2587 = vmatmul.mubr.f32.gmra.mxu0 %v2210
    %v2588 = vpop.f32.mrf.mxu0
    %v2589 = vadd.f32 %v2484, %v2588
    %v2590 = vpop.f32.mrf.mxu0
    %2591 = vmatprep.mubr.f32.mxu0 %v2215
    %2592 = vmatmul.mubr.f32.gmra.mxu0 %v2214
    %v2593 = vpop.f32.mrf.mxu0
    %v2594 = vadd.f32 %v2489, %v2593
    %v2595 = vpop.f32.mrf.mxu0
    %2596 = vmatprep.mubr.f32.mxu0 %v2219
    %2597 = vmatmul.mubr.f32.gmra.mxu0 %v2218
    %v2598 = vpop.f32.mrf.mxu0
    %v2599 = vadd.f32 %v2494, %v2598
    %v2600 = vpop.f32.mrf.mxu0
    %2601 = vmatprep.mubr.f32.mxu0 %v2223
    %2602 = vmatmul.mubr.f32.gmra.mxu0 %v2222
    %v2603 = vpop.f32.mrf.mxu0
    %v2604 = vadd.f32 %v2499, %v2603
    %v2605 = vpop.f32.mrf.mxu0
    %2606 = vmatprep.mubr.f32.mxu0 %v2227
    %2607 = vmatmul.mubr.f32.gmra.mxu0 %v2226
    %v2608 = vpop.f32.mrf.mxu0
    %v2609 = vadd.f32 %v2504, %v2608
    %v2610 = vpop.f32.mrf.mxu0
    %2611 = vmatprep.mubr.f32.mxu0 %v2231
    %2612 = vmatmul.mubr.f32.gmra.mxu0 %v2230
    %v2613 = vpop.f32.mrf.mxu0
    %v2614 = vadd.f32 %v2509, %v2613
    %v2615 = vpop.f32.mrf.mxu0
    %2616 = vmatprep.mubr.f32.mxu0 %v2235
    %2617 = vmatmul.mubr.f32.gmra.mxu0 %v2234
    %v2618 = vpop.f32.mrf.mxu0
    %v2619 = vadd.f32 %v2514, %v2618
    %v2620 = vpop.f32.mrf.mxu0
    %2621 = vmatprep.mubr.f32.mxu0 %v2239
    %2622 = vmatmul.mubr.f32.gmra.mxu0 %v2238
    %v2623 = vpop.f32.mrf.mxu0
    %v2624 = vadd.f32 %v2519, %v2623
    %v2625 = vpop.f32.mrf.mxu0
    %2626 = vdwg.mxu0
    %2627 = vadd.xlane.f32.xlu0 %v2589
    %v2628 = vpop.xlane.xlu0 %2627
    %2629 = vadd.xlane.f32.xlu0 %v2594
    %v2630 = vpop.xlane.xlu0 %2629
    %2631 = vadd.xlane.f32.xlu0 %v2599
    %v2632 = vpop.xlane.xlu0 %2631
    %2633 = vadd.xlane.f32.xlu0 %v2604
    %v2634 = vpop.xlane.xlu0 %2633
    %2635 = vadd.xlane.f32.xlu0 %v2609
    %v2636 = vpop.xlane.xlu0 %2635
    %2637 = vadd.xlane.f32.xlu0 %v2614
    %v2638 = vpop.xlane.xlu0 %2637
    %2639 = vadd.xlane.f32.xlu0 %v2619
    %v2640 = vpop.xlane.xlu0 %2639
    %2641 = vadd.xlane.f32.xlu0 %v2624
    %v2642 = vpop.xlane.xlu0 %2641
    %v2643 = vmul.f32 %v2628, %v653
    %v2644 = vmul.f32 %v2630, %v653
    %v2645 = vmul.f32 %v2632, %v653
    %v2646 = vmul.f32 %v2634, %v653
    %v2647 = vmul.f32 %v2636, %v653
    %v2648 = vmul.f32 %v2638, %v653
    %v2649 = vmul.f32 %v2640, %v653
    %v2650 = vmul.f32 %v2642, %v653
    %v2651 = vmul.f32 %v2589, %v2589
    %v2652 = vmul.f32 %v2594, %v2594
    %v2653 = vmul.f32 %v2599, %v2599
    %v2654 = vmul.f32 %v2604, %v2604
    %v2655 = vmul.f32 %v2609, %v2609
    %v2656 = vmul.f32 %v2614, %v2614
    %v2657 = vmul.f32 %v2619, %v2619
    %v2658 = vmul.f32 %v2624, %v2624
    %2659 = vadd.xlane.f32.xlu0 %v2651
    %v2660 = vpop.xlane.xlu0 %2659
    %2661 = vadd.xlane.f32.xlu0 %v2652
    %v2662 = vpop.xlane.xlu0 %2661
    %2663 = vadd.xlane.f32.xlu0 %v2653
    %v2664 = vpop.xlane.xlu0 %2663
    %2665 = vadd.xlane.f32.xlu0 %v2654
    %v2666 = vpop.xlane.xlu0 %2665
    %2667 = vadd.xlane.f32.xlu0 %v2655
    %v2668 = vpop.xlane.xlu0 %2667
    %2669 = vadd.xlane.f32.xlu0 %v2656
    %v2670 = vpop.xlane.xlu0 %2669
    %2671 = vadd.xlane.f32.xlu0 %v2657
    %v2672 = vpop.xlane.xlu0 %2671
    %2673 = vadd.xlane.f32.xlu0 %v2658
    %v2674 = vpop.xlane.xlu0 %2673
    %v2675 = vmul.f32 %v2660, %v653
    %v2676 = vmul.f32 %v2662, %v653
    %v2677 = vmul.f32 %v2664, %v653
    %v2678 = vmul.f32 %v2666, %v653
    %v2679 = vmul.f32 %v2668, %v653
    %v2680 = vmul.f32 %v2670, %v653
    %v2681 = vmul.f32 %v2672, %v653
    %v2682 = vmul.f32 %v2674, %v653
    %v2683 = vmul.f32 %v2643, %v2643
    %v2684 = vmul.f32 %v2644, %v2644
    %v2685 = vmul.f32 %v2645, %v2645
    %v2686 = vmul.f32 %v2646, %v2646
    %v2687 = vmul.f32 %v2647, %v2647
    %v2688 = vmul.f32 %v2648, %v2648
    %v2689 = vmul.f32 %v2649, %v2649
    %v2690 = vmul.f32 %v2650, %v2650
    %v2691 = vsub.f32 %v2675, %v2683
    %v2692 = vsub.f32 %v2676, %v2684
    %v2693 = vsub.f32 %v2677, %v2685
    %v2694 = vsub.f32 %v2678, %v2686
    %v2695 = vsub.f32 %v2679, %v2687
    %v2696 = vsub.f32 %v2680, %v2688
    %v2697 = vsub.f32 %v2681, %v2689
    %v2698 = vsub.f32 %v2682, %v2690
    %v2699 = vmax.f32 %v2691, 0.0
    %v2700 = vmax.f32 %v2692, 0.0
    %v2701 = vmax.f32 %v2693, 0.0
    %v2702 = vmax.f32 %v2694, 0.0
    %v2703 = vmax.f32 %v2695, 0.0
    %v2704 = vmax.f32 %v2696, 0.0
    %v2705 = vmax.f32 %v2697, 0.0
    %v2706 = vmax.f32 %v2698, 0.0
    %v2707 = vadd.f32 %v2699, 1e-12
    %v2708 = vadd.f32 %v2700, 1e-12
    %v2709 = vadd.f32 %v2701, 1e-12
    %v2710 = vadd.f32 %v2702, 1e-12
    %v2711 = vadd.f32 %v2703, 1e-12
    %v2712 = vadd.f32 %v2704, 1e-12
    %v2713 = vadd.f32 %v2705, 1e-12
    %v2714 = vadd.f32 %v2706, 1e-12
    %v2715 = vrsqrt.pop %v2707
    %v2716 = vrsqrt.pop %v2708
    %v2717 = vrsqrt.pop %v2709
    %v2718 = vrsqrt.pop %v2710
    %v2719 = vrsqrt.pop %v2711
    %v2720 = vrsqrt.pop %v2712
    %v2721 = vrsqrt.pop %v2713
    %v2722 = vrsqrt.pop %v2714
    %v2723 = vsub.f32 %v2589, %v2643
    %v2724 = vsub.f32 %v2594, %v2644
    %v2725 = vsub.f32 %v2599, %v2645
    %v2726 = vsub.f32 %v2604, %v2646
    %v2727 = vsub.f32 %v2609, %v2647
    %v2728 = vsub.f32 %v2614, %v2648
    %v2729 = vsub.f32 %v2619, %v2649
    %v2730 = vsub.f32 %v2624, %v2650
    %v2731 = vmul.f32 %v2723, %v2715
    %v2732 = vmul.f32 %v2724, %v2716
    %v2733 = vmul.f32 %v2725, %v2717
    %v2734 = vmul.f32 %v2726, %v2718
    %v2735 = vmul.f32 %v2727, %v2719
    %v2736 = vmul.f32 %v2728, %v2720
    %v2737 = vmul.f32 %v2729, %v2721
    %v2738 = vmul.f32 %v2730, %v2722
    %v2739 = vmul.f32 %v2731, %v754
    %v2740 = vmul.f32 %v2732, %v754
    %v2741 = vmul.f32 %v2733, %v754
    %v2742 = vmul.f32 %v2734, %v754
    %v2743 = vmul.f32 %v2735, %v754
    %v2744 = vmul.f32 %v2736, %v754
    %v2745 = vmul.f32 %v2737, %v754
    %v2746 = vmul.f32 %v2738, %v754
    %v2747 = vadd.f32 %v2739, %v768
    %v2748 = vadd.f32 %v2740, %v768
    %v2749 = vadd.f32 %v2741, %v768
    %v2750 = vadd.f32 %v2742, %v768
    %v2751 = vadd.f32 %v2743, %v768
    %v2752 = vadd.f32 %v2744, %v768
    %v2753 = vadd.f32 %v2745, %v768
    %v2754 = vadd.f32 %v2746, %v768
    %2755 = vst [vmem:[#allocation5 + $0xc0] sm:$0xff] %v2747
    %2756 = vst [vmem:[#allocation5 + $0xc8] sm:$0xff] %v2748
    %2757 = vst [vmem:[#allocation5 + $0xd0] sm:$0xff] %v2749
    %2758 = vst [vmem:[#allocation5 + $0xd8] sm:$0xff] %v2750
    %2759 = vst [vmem:[#allocation5 + $0xe0] sm:$0xff] %v2751
    %2760 = vst [vmem:[#allocation5 + $0xe8] sm:$0xff] %v2752
    %2761 = vst [vmem:[#allocation5 + $0xf0] sm:$0xff] %v2753
    %2762 = vst [vmem:[#allocation5 + $0xf8] sm:$0xff] %v2754
    // Predicated region
    $region30: #{tpu_custom_call.1} parent=1 // pred_check
      _
    $region31: #{tpu_custom_call.1} parent=1 // pred_check_branch
      %2764 = sbr.rel (0) target = $region33
    $region32: #{tpu_custom_call.1} parent=1 // pred_region
      %s2766 = ssub.s32 4096, 4096
      %2767 = vsyncadd [#allocation4], %s2766
      %s2768 = sshll.u32 [#allocation5], 4
      %s2769 = int_to_ptr.vmem [resolvable:$true] %s2768
      %2774 = dma.vmem_to_hbm [thread:$0]  %s2769, 4096, %s6, [#allocation4], 128, 128, 8
    $region33: #{tpu_custom_call.1} parent=1 // pred_fallthru
      _
    // Predicated region
    $region34: #{tpu_custom_call.1} parent=1 // pred_check
      _
    $region35: #{tpu_custom_call.1} parent=1 // pred_check_branch
      %2776 = sbr.rel (0) target = $region37
    $region36: #{tpu_custom_call.1} parent=1 // pred_region
      %2777 = dma.done [#allocation4], 4096
    $region37: #{tpu_custom_call.1} parent=1 // pred_fallthru
      _
    %2778 = vsyncpa [#allocation3], 1
    %2779 = vsyncpa [#allocation4], 1

</llo_original>
